<compile_context>
chip_gen: v7x
topology: tpu7x:2x2x1
jax: 0.10.0
libtpu: 0.0.40
codegen_flags: <defaults>
</compile_context>

<pallas_src>
import functools

import jax
import jax.numpy as jnp
import numpy as np
from jax.experimental import pallas as pl
from jax.experimental.pallas import tpu as pltpu

_H1, _H2 = 400, 300   # MLPBase hidden sizes (fixed by the module)
_MSG_HID = 64         # fc1/fc2 hidden width (fixed by the module)
_MOFF = 64            # lane offset of the messages inside the packed slab


def _round_up(n, m):
    return ((n + m - 1) // m) * m


def _pad2(w, rows, cols):
    """Zero-pad a 2-D array up to (rows, cols)."""
    return jnp.pad(w, ((0, rows - w.shape[0]), (0, cols - w.shape[1])))


def _fit_lanes(a, w):
    """Pad/slice the lane (last) dim of `a` to width w (trace-time branch)."""
    c = a.shape[-1]
    if c == w:
        return a
    if c < w:
        return jnp.pad(a, ((0, 0), (0, w - c)))
    return a[:, :w]


# -----------------------------------------------------------------------------
# Pallas kernel
# -----------------------------------------------------------------------------
def _critic_up_action_kernel(msg_dim, h1p, h2p, moff, out_w,
                             acts_ref, w1q_ref, w2q_ref, wmsg_ref, b_ref,
                             out_ref):
    f32, bf16 = jnp.float32, jnp.bfloat16
    eps2 = jnp.float32(1e-24)  # (torch F.normalize eps)^2

    B, slab_w = acts_ref.shape
    acts = acts_ref[...]                       # (B, slab_w) f32, [x|u|0|m|0]

    # ---- unpack the single bias slab (static, tile-aligned slices) ----------
    b = b_ref[...]                             # (8, 2*h1p) f32
    ql1_b   = b[0:1, :]
    q1_l2_b = b[1:2, 0:h2p]
    q2_l2_b = b[1:2, h2p:2 * h2p]
    q1_l3_w = b[2:3, 0:h2p]
    q2_l3_w = b[2:3, h2p:2 * h2p]
    q1_l3_b = b[3:4, 0:1]
    q2_l3_b = b[3:4, 1:2]
    fc1_b   = b[4:5, 0:out_w]
    fc2_b   = b[5:6, 0:out_w]
    fc3_b   = b[6:7, 0:out_w]

    # ---- Q heads: ONE fused bf16 K=slab_w MXU pass for both heads' l1 -------
    acts_bf = acts.astype(bf16)
    h = jnp.dot(acts_bf, w1q_ref[...], preferred_element_type=f32)  # (B, 2*h1p)
    h = jnp.maximum(h + ql1_b, 0.0)
    h1 = h[:, :h1p]                            # q1 hidden (128-aligned slice)
    h2 = h[:, h1p:]                            # q2 hidden

    # second layers, bf16 weights (stacked), f32 accumulate
    g1 = jnp.maximum(
        jnp.dot(h1.astype(bf16), w2q_ref[0], preferred_element_type=f32)
        + q1_l2_b, 0.0)
    g2 = jnp.maximum(
        jnp.dot(h2.astype(bf16), w2q_ref[1], preferred_element_type=f32)
        + q2_l2_b, 0.0)

    # third layers (300 -> 1) as VPU multiply + XLU lane reduction (f32)
    q1 = jnp.sum(g1 * q1_l3_w, axis=-1, keepdims=True) + q1_l3_b
    q2 = jnp.sum(g2 * q2_l3_w, axis=-1, keepdims=True) + q2_l3_b

    # ---- message head (all f32) ----------------------------------------------
    # fc1: one K=slab_w dot (message rows of the weight are zero)
    hm = jnp.dot(acts, wmsg_ref[0], preferred_element_type=f32) + fc1_b   # (B, out_w)
    inv = jax.lax.rsqrt(jnp.maximum(jnp.sum(hm * hm, axis=-1, keepdims=True), eps2))
    hm = hm * inv                               # lanes >= 64 stay exactly 0

    # fc2 input slab: lanes [0,64) <- normalized hm, lanes >= 64 <- messages
    lane = jax.lax.broadcasted_iota(jnp.int32, (B, slab_w), 1)
    fc2_in = jnp.tanh(jnp.where(lane < moff, _fit_lanes(hm, slab_w), acts))
    z = jnp.tanh(jnp.dot(fc2_in, wmsg_ref[1], preferred_element_type=f32) + fc2_b)

    # fc3 + normalize (weight rows >= 64 / cols >= msg_dim are zero-padded)
    msg = jnp.dot(_fit_lanes(z, slab_w), wmsg_ref[2],
                  preferred_element_type=f32) + fc3_b
    inv = jax.lax.rsqrt(jnp.maximum(jnp.sum(msg * msg, axis=-1, keepdims=True), eps2))
    msg = msg * inv                             # lanes >= msg_dim are 0

    # pack q1 / q2 into lanes msg_dim / msg_dim+1 of the single output slab
    lane_o = jax.lax.broadcasted_iota(jnp.int32, (B, out_w), 1)
    out = jnp.where(lane_o == msg_dim, q1, msg)
    out = jnp.where(lane_o == msg_dim + 1, q2, out)
    out_ref[...] = out


# -----------------------------------------------------------------------------
# One-time parameter prep: fuse / scatter / pad / quantize into kernel slabs
# -----------------------------------------------------------------------------
def prepare_params(params, state_dim, action_dim, msg_dim, max_children):
    sd, ad, md, nc = state_dim, action_dim, msg_dim, max_children
    assert sd + ad <= _MOFF, "x|u must fit before the message lane offset"
    h1p = _round_up(_H1, 128)                      # 512
    h2p = _round_up(_H2, 128)                      # 384
    slab_w = _round_up(_MOFF + md * nc, 128)       # packed input width
    out_w = _round_up(md + 2, 128)                 # lane-dense output width
    assert out_w <= 2 * h1p and 2 * h2p <= 2 * h1p

    def pad_cols(w, cols):
        return jnp.pad(w, ((0, 0), (0, cols - w.shape[1])))

    def scatter_rows(w):
        # (sd+ad+md*nc, N) -> (slab_w, N): x|u rows at [0, sd+ad), msg rows at
        # [_MOFF, _MOFF + md*nc), everything else zero (matches the acts slab).
        out = jnp.zeros((slab_w, w.shape[1]), w.dtype)
        out = out.at[:sd + ad].set(w[:sd + ad])
        out = out.at[_MOFF:_MOFF + md * nc].set(w[sd + ad:])
        return out

    kp = {"slab_w": slab_w, "out_w": out_w, "h1p": h1p, "h2p": h2p,
          "moff": _MOFF}

    # fused Q first-layer weight (both heads), bf16, laid out for the acts slab
    kp["w1q"] = jnp.concatenate(
        [scatter_rows(pad_cols(params["q1_l1_w"], h1p)),
         scatter_rows(pad_cols(params["q2_l1_w"], h1p))],
        axis=1).astype(jnp.bfloat16)                         # (slab_w, 2*h1p)

    # stacked Q second-layer weights, bf16, padded 400->512, 300->384
    kp["w2q"] = jnp.stack(
        [_pad2(params["q1_l2_w"], h1p, h2p),
         _pad2(params["q2_l2_w"], h1p, h2p)]).astype(jnp.bfloat16)  # (2,h1p,h2p)

    # stacked message-head weights, f32.  fc2's original row layout
    # ([hm(64) | m]) matches the acts slab because _MOFF == 64.
    kp["wmsg"] = jnp.stack(
        [_pad2(params["fc1_w"], slab_w, out_w),
         _pad2(params["fc2_w"], slab_w, out_w),
         _pad2(params["fc3_w"], slab_w, out_w)])              # (3, slab_w, out_w)

    # single bias slab (f32): row0 ql1_b | row1 l2 biases | row2 l3 weight rows
    # | row3 l3 biases | rows4-6 fc1/fc2/fc3 biases
    b = jnp.zeros((8, 2 * h1p), jnp.float32)
    ql1_b = jnp.concatenate([_pad2(params["q1_l1_b"], 1, h1p),
                             _pad2(params["q2_l1_b"], 1, h1p)], axis=1)
    b = b.at[0, :].set(ql1_b[0])
    b = b.at[1, 0:h2p].set(_pad2(params["q1_l2_b"], 1, h2p)[0])
    b = b.at[1, h2p:2 * h2p].set(_pad2(params["q2_l2_b"], 1, h2p)[0])
    b = b.at[2, 0:h2p].set(_pad2(params["q1_l3_w"].T, 1, h2p)[0])
    b = b.at[2, h2p:2 * h2p].set(_pad2(params["q2_l3_w"].T, 1, h2p)[0])
    b = b.at[3, 0].set(params["q1_l3_b"][0, 0])
    b = b.at[3, 1].set(params["q2_l3_b"][0, 0])
    b = b.at[4, 0:out_w].set(_pad2(params["fc1_b"], 1, out_w)[0])
    b = b.at[5, 0:out_w].set(_pad2(params["fc2_b"], 1, out_w)[0])
    b = b.at[6, 0:out_w].set(_pad2(params["fc3_b"], 1, out_w)[0])
    kp["b"] = b
    return kp


# -----------------------------------------------------------------------------
# Wrapper
# -----------------------------------------------------------------------------
def critic_up_action(x, u, msgs, kp, msg_dim):
    """Pallas implementation of CriticUpAction.forward(x, u, *m)."""
    B = x.shape[0]
    slab_w, out_w = kp["slab_w"], kp["out_w"]
    h1p, h2p, moff = kp["h1p"], kp["h2p"], kp["moff"]

    # packed activation slab: [x | u | zeros.. | m1 | m2 | zeros..]
    xu = jnp.concatenate([x, u], axis=-1)
    m = jnp.concatenate(msgs, axis=-1)
    parts = [xu]
    if moff > xu.shape[1]:
        parts.append(jnp.zeros((B, moff - xu.shape[1]), jnp.float32))
    parts.append(m)
    tail = slab_w - moff - m.shape[1]
    if tail > 0:
        parts.append(jnp.zeros((B, tail), jnp.float32))
    acts = jnp.concatenate(parts, axis=-1)

    vmem = pl.BlockSpec(memory_space=pltpu.MemorySpace.VMEM)
    out = pl.pallas_call(
        functools.partial(_critic_up_action_kernel, msg_dim, h1p, h2p, moff, out_w),
        out_shape=jax.ShapeDtypeStruct((B, out_w), jnp.float32),
        in_specs=[vmem] * 5,
        out_specs=vmem,
        compiler_params=pltpu.CompilerParams(vmem_limit_bytes=16 << 20),
    )(acts, kp["w1q"], kp["w2q"], kp["wmsg"], kp["b"])

    msg_up = out[:, :msg_dim]
    x1 = out[:, msg_dim:msg_dim + 1]
    x2 = out[:, msg_dim + 1:msg_dim + 2]
    return msg_up, x1, x2


# -----------------------------------------------------------------------------
# Parameter init (deterministic, PyTorch-Linear-style uniform init)
# -----------------------------------------------------------------------------
def _linear(key, fan_in, fan_out):
    k_w, k_b = jax.random.split(key)
    bound = 1.0 / np.sqrt(fan_in)
    w = jax.random.uniform(k_w, (fan_in, fan_out), jnp.float32, -bound, bound)
    b = jax.random.uniform(k_b, (1, fan_out), jnp.float32, -bound, bound)
    return w, b


def init_params(key, state_dim, action_dim, msg_dim, max_children):
    keys = jax.random.split(key, 9)
    params = {}
    params["fc1_w"], params["fc1_b"] = _linear(keys[0], state_dim + action_dim, 64)
    params["fc2_w"], params["fc2_b"] = _linear(keys[1], 64 + msg_dim * max_children, 64)
    params["fc3_w"], params["fc3_b"] = _linear(keys[2], 64, msg_dim)
    q_in = state_dim + action_dim + msg_dim * max_children
    for prefix, ks in (("q1", keys[3:6]), ("q2", keys[6:9])):
        params[f"{prefix}_l1_w"], params[f"{prefix}_l1_b"] = _linear(ks[0], q_in, _H1)
        params[f"{prefix}_l2_w"], params[f"{prefix}_l2_b"] = _linear(ks[1], _H1, _H2)
        params[f"{prefix}_l3_w"], params[f"{prefix}_l3_b"] = _linear(ks[2], _H2, 1)
    return params


# -----------------------------------------------------------------------------
# Pure-JAX references
# -----------------------------------------------------------------------------
def reference_forward(x, u, msgs, params):
    """Mirrors the PyTorch forward exactly, full f32."""
    eps = 1e-12
    m = jnp.concatenate(msgs, axis=-1)
    xum = jnp.concatenate([x, u, m], axis=-1)

    def mlp_base(p, pre):
        h = jnp.maximum(xum @ p[f"{pre}_l1_w"] + p[f"{pre}_l1_b"], 0.0)
        h = jnp.maximum(h @ p[f"{pre}_l2_w"] + p[f"{pre}_l2_b"], 0.0)
        return h @ p[f"{pre}_l3_w"] + p[f"{pre}_l3_b"]

    x1 = mlp_base(params, "q1")
    x2 = mlp_base(params, "q2")

    xu = jnp.concatenate([x, u], axis=-1)
    h = xu @ params["fc1_w"] + params["fc1_b"]
    h = h / jnp.maximum(jnp.linalg.norm(h, axis=-1, keepdims=True), eps)
    z = jnp.tanh(jnp.concatenate([h, m], axis=-1))
    z = jnp.tanh(z @ params["fc2_w"] + params["fc2_b"])
    z = z @ params["fc3_w"] + params["fc3_b"]
    z = z / jnp.maximum(jnp.linalg.norm(z, axis=-1, keepdims=True), eps)
    return z, x1, x2


def reference_q_matched(x, u, msgs, params, prefix):
    """Q head with the same bf16 weight/activation rounding the kernel uses."""
    bf = lambda a: a.astype(jnp.bfloat16).astype(jnp.float32)
    xum = jnp.concatenate([x, u] + list(msgs), axis=-1)
    h = jnp.maximum(bf(xum) @ bf(params[f"{prefix}_l1_w"]) + params[f"{prefix}_l1_b"], 0.0)
    h = jnp.maximum(bf(h) @ bf(params[f"{prefix}_l2_w"]) + params[f"{prefix}_l2_b"], 0.0)
    return h @ params[f"{prefix}_l3_w"] + params[f"{prefix}_l3_b"]


# -----------------------------------------------------------------------------
if __name__ == "__main__":
    state_dim, action_dim, msg_dim, max_children = 11, 3, 32, 2
    batch = 8  # multiple of 8 (sublane aligned)

    key = jax.random.PRNGKey(0)
    k_params, k_x, k_u, k_m1, k_m2 = jax.random.split(key, 5)

    params = init_params(k_params, state_dim, action_dim, msg_dim, max_children)
    kparams = prepare_params(params, state_dim, action_dim, msg_dim, max_children)

    x = jax.random.normal(k_x, (batch, state_dim), jnp.float32)
    u = jax.random.normal(k_u, (batch, action_dim), jnp.float32)
    m1 = jax.random.normal(k_m1, (batch, msg_dim), jnp.float32)
    m2 = jax.random.normal(k_m2, (batch, msg_dim), jnp.float32)
    msgs = (m1, m2)

    msg_up, q1, q2 = critic_up_action(x, u, msgs, kparams, msg_dim)
    jax.block_until_ready((msg_up, q1, q2))

    # message head is full f32 -> tight check against the exact reference
    ref_msg, ref_q1, ref_q2 = reference_forward(x, u, msgs, params)
    np.testing.assert_allclose(np.asarray(msg_up), np.asarray(ref_msg),
                               rtol=1e-4, atol=1e-5)

    # Q heads use bf16 weights: tight check vs a precision-matched reference,
    # loose sanity check vs the full-f32 reference (bf16 quantization error).
    mq1 = reference_q_matched(x, u, msgs, params, "q1")
    mq2 = reference_q_matched(x, u, msgs, params, "q2")
    np.testing.assert_allclose(np.asarray(q1), np.asarray(mq1), rtol=1e-3, atol=1e-3)
    np.testing.assert_allclose(np.asarray(q2), np.asarray(mq2), rtol=1e-3, atol=1e-3)
    np.testing.assert_allclose(np.asarray(q1), np.asarray(ref_q1), rtol=3e-2, atol=3e-2)
    np.testing.assert_allclose(np.asarray(q2), np.asarray(ref_q2), rtol=3e-2, atol=3e-2)

    print("KERNEL_OK")
</pallas_src>

<mosaic_0001>
module attributes {stable_mosaic.version = 11 : i64} {
  func.func @_critic_up_action_kernel(%arg0: memref<8x128xf32, #tpu.memory_space<vmem>>, %arg1: memref<128x1024xbf16, #tpu.memory_space<vmem>>, %arg2: memref<2x512x384xbf16, #tpu.memory_space<vmem>>, %arg3: memref<3x128x128xf32, #tpu.memory_space<vmem>>, %arg4: memref<8x1024xf32, #tpu.memory_space<vmem>>, %arg5: memref<8x128xf32, #tpu.memory_space<vmem>>) attributes {dimension_semantics = [], scalar_prefetch = 0 : i64, scratch_operands = 0 : i64, tpu.core_type = #tpu.core_type<tc>} {
    %c0 = arith.constant 0 : index
    %c0_0 = arith.constant 0 : index
    %0 = vector.load %arg0[%c0, %c0_0] : memref<8x128xf32, #tpu.memory_space<vmem>>, vector<8x128xf32>
    %c0_1 = arith.constant 0 : index
    %c0_2 = arith.constant 0 : index
    %1 = vector.load %arg4[%c0_1, %c0_2] : memref<8x1024xf32, #tpu.memory_space<vmem>>, vector<8x1024xf32>
    %2 = vector.extract_strided_slice %1 {offsets = [0, 0], sizes = [1, 1024], strides = [1, 1]} : vector<8x1024xf32> to vector<1x1024xf32>
    %3 = vector.extract_strided_slice %1 {offsets = [1, 0], sizes = [1, 384], strides = [1, 1]} : vector<8x1024xf32> to vector<1x384xf32>
    %4 = vector.extract_strided_slice %1 {offsets = [1, 384], sizes = [1, 384], strides = [1, 1]} : vector<8x1024xf32> to vector<1x384xf32>
    %5 = vector.extract_strided_slice %1 {offsets = [2, 0], sizes = [1, 384], strides = [1, 1]} : vector<8x1024xf32> to vector<1x384xf32>
    %6 = vector.extract_strided_slice %1 {offsets = [2, 384], sizes = [1, 384], strides = [1, 1]} : vector<8x1024xf32> to vector<1x384xf32>
    %7 = vector.extract_strided_slice %1 {offsets = [3, 0], sizes = [1, 1], strides = [1, 1]} : vector<8x1024xf32> to vector<1x1xf32>
    %8 = vector.extract_strided_slice %1 {offsets = [3, 1], sizes = [1, 1], strides = [1, 1]} : vector<8x1024xf32> to vector<1x1xf32>
    %9 = vector.extract_strided_slice %1 {offsets = [4, 0], sizes = [1, 128], strides = [1, 1]} : vector<8x1024xf32> to vector<1x128xf32>
    %10 = vector.extract_strided_slice %1 {offsets = [5, 0], sizes = [1, 128], strides = [1, 1]} : vector<8x1024xf32> to vector<1x128xf32>
    %11 = vector.extract_strided_slice %1 {offsets = [6, 0], sizes = [1, 128], strides = [1, 1]} : vector<8x1024xf32> to vector<1x128xf32>
    %12 = arith.truncf %0 : vector<8x128xf32> to vector<8x128xbf16>
    %c0_3 = arith.constant 0 : index
    %c0_4 = arith.constant 0 : index
    %13 = vector.load %arg1[%c0_3, %c0_4] : memref<128x1024xbf16, #tpu.memory_space<vmem>>, vector<128x1024xbf16>
    %cst = arith.constant dense<0.000000e+00> : vector<8x1024xf32>
    %14 = tpu.matmul %12, %13, %cst {dimension_numbers = #tpu.dot_dimension_numbers<[1], [0], [0], [1], [0, 0, 1, 1], [], []>} : vector<8x128xbf16>, vector<128x1024xbf16>, vector<8x1024xf32> -> vector<8x1024xf32>
    %15 = vector.broadcast %2 : vector<1x1024xf32> to vector<8x1024xf32>
    %16 = arith.addf %14, %15 : vector<8x1024xf32>
    %cst_5 = arith.constant 0.000000e+00 : f32
    %17 = vector.broadcast %cst_5 : f32 to vector<8x1024xf32>
    %18 = arith.maximumf %16, %17 : vector<8x1024xf32>
    %19 = vector.extract_strided_slice %18 {offsets = [0, 0], sizes = [8, 512], strides = [1, 1]} : vector<8x1024xf32> to vector<8x512xf32>
    %20 = vector.extract_strided_slice %18 {offsets = [0, 512], sizes = [8, 512], strides = [1, 1]} : vector<8x1024xf32> to vector<8x512xf32>
    %21 = arith.truncf %19 : vector<8x512xf32> to vector<8x512xbf16>
    %c0_6 = arith.constant 0 : index
    %c0_7 = arith.constant 0 : index
    %c0_8 = arith.constant 0 : index
    %22 = vector.load %arg2[%c0_6, %c0_7, %c0_8] : memref<2x512x384xbf16, #tpu.memory_space<vmem>>, vector<1x512x384xbf16>
    %23 = vector.shape_cast %22 : vector<1x512x384xbf16> to vector<512x384xbf16>
    %cst_9 = arith.constant dense<0.000000e+00> : vector<8x384xf32>
    %24 = tpu.matmul %21, %23, %cst_9 {dimension_numbers = #tpu.dot_dimension_numbers<[1], [0], [0], [1], [0, 0, 1, 1], [], []>} : vector<8x512xbf16>, vector<512x384xbf16>, vector<8x384xf32> -> vector<8x384xf32>
    %25 = vector.broadcast %3 : vector<1x384xf32> to vector<8x384xf32>
    %26 = arith.addf %24, %25 : vector<8x384xf32>
    %cst_10 = arith.constant 0.000000e+00 : f32
    %27 = vector.broadcast %cst_10 : f32 to vector<8x384xf32>
    %28 = arith.maximumf %26, %27 : vector<8x384xf32>
    %29 = arith.truncf %20 : vector<8x512xf32> to vector<8x512xbf16>
    %c1 = arith.constant 1 : index
    %c0_11 = arith.constant 0 : index
    %c0_12 = arith.constant 0 : index
    %30 = vector.load %arg2[%c1, %c0_11, %c0_12] : memref<2x512x384xbf16, #tpu.memory_space<vmem>>, vector<1x512x384xbf16>
    %31 = vector.shape_cast %30 : vector<1x512x384xbf16> to vector<512x384xbf16>
    %cst_13 = arith.constant dense<0.000000e+00> : vector<8x384xf32>
    %32 = tpu.matmul %29, %31, %cst_13 {dimension_numbers = #tpu.dot_dimension_numbers<[1], [0], [0], [1], [0, 0, 1, 1], [], []>} : vector<8x512xbf16>, vector<512x384xbf16>, vector<8x384xf32> -> vector<8x384xf32>
    %33 = vector.broadcast %4 : vector<1x384xf32> to vector<8x384xf32>
    %34 = arith.addf %32, %33 : vector<8x384xf32>
    %cst_14 = arith.constant 0.000000e+00 : f32
    %35 = vector.broadcast %cst_14 : f32 to vector<8x384xf32>
    %36 = arith.maximumf %34, %35 : vector<8x384xf32>
    %37 = vector.broadcast %5 : vector<1x384xf32> to vector<8x384xf32>
    %38 = arith.mulf %28, %37 : vector<8x384xf32>
    %cst_15 = arith.constant dense<0.000000e+00> : vector<8xf32>
    %39 = vector.multi_reduction <add>, %38, %cst_15 [1] : vector<8x384xf32> to vector<8xf32>
    %40 = vector.shape_cast %39 : vector<8xf32> to vector<8x1xf32>
    %41 = vector.broadcast %7 : vector<1x1xf32> to vector<8x1xf32>
    %42 = arith.addf %40, %41 : vector<8x1xf32>
    %43 = vector.broadcast %6 : vector<1x384xf32> to vector<8x384xf32>
    %44 = arith.mulf %36, %43 : vector<8x384xf32>
    %cst_16 = arith.constant dense<0.000000e+00> : vector<8xf32>
    %45 = vector.multi_reduction <add>, %44, %cst_16 [1] : vector<8x384xf32> to vector<8xf32>
    %46 = vector.shape_cast %45 : vector<8xf32> to vector<8x1xf32>
    %47 = vector.broadcast %8 : vector<1x1xf32> to vector<8x1xf32>
    %48 = arith.addf %46, %47 : vector<8x1xf32>
    %c0_17 = arith.constant 0 : index
    %c0_18 = arith.constant 0 : index
    %c0_19 = arith.constant 0 : index
    %49 = vector.load %arg3[%c0_17, %c0_18, %c0_19] : memref<3x128x128xf32, #tpu.memory_space<vmem>>, vector<1x128x128xf32>
    %50 = vector.shape_cast %49 : vector<1x128x128xf32> to vector<128x128xf32>
    %cst_20 = arith.constant dense<0.000000e+00> : vector<8x128xf32>
    %51 = tpu.matmul %0, %50, %cst_20 {dimension_numbers = #tpu.dot_dimension_numbers<[1], [0], [0], [1], [0, 0, 1, 1], [], []>} : vector<8x128xf32>, vector<128x128xf32>, vector<8x128xf32> -> vector<8x128xf32>
    %52 = vector.broadcast %9 : vector<1x128xf32> to vector<8x128xf32>
    %53 = arith.addf %51, %52 : vector<8x128xf32>
    %54 = arith.mulf %53, %53 : vector<8x128xf32>
    %cst_21 = arith.constant dense<0.000000e+00> : vector<8xf32>
    %55 = vector.multi_reduction <add>, %54, %cst_21 [1] : vector<8x128xf32> to vector<8xf32>
    %56 = vector.shape_cast %55 : vector<8xf32> to vector<8x1xf32>
    %cst_22 = arith.constant 1.000000e-24 : f32
    %57 = vector.broadcast %cst_22 : f32 to vector<8x1xf32>
    %58 = arith.maximumf %56, %57 : vector<8x1xf32>
    %59 = math.rsqrt %58 : vector<8x1xf32>
    %60 = vector.broadcast %59 : vector<8x1xf32> to vector<8x128xf32>
    %61 = arith.mulf %53, %60 : vector<8x128xf32>
    %62 = tpu.iota {dimensions = array<i32: 1>} : vector<8x128xi32>
    %c64_i32 = arith.constant 64 : i32
    %63 = vector.broadcast %c64_i32 : i32 to vector<8x128xi32>
    %64 = arith.cmpi slt, %62, %63 : vector<8x128xi32>
    %65 = arith.select %64, %61, %0 : vector<8x128xi1>, vector<8x128xf32>
    %66 = math.tanh %65 : vector<8x128xf32>
    %c1_23 = arith.constant 1 : index
    %c0_24 = arith.constant 0 : index
    %c0_25 = arith.constant 0 : index
    %67 = vector.load %arg3[%c1_23, %c0_24, %c0_25] : memref<3x128x128xf32, #tpu.memory_space<vmem>>, vector<1x128x128xf32>
    %68 = vector.shape_cast %67 : vector<1x128x128xf32> to vector<128x128xf32>
    %cst_26 = arith.constant dense<0.000000e+00> : vector<8x128xf32>
    %69 = tpu.matmul %66, %68, %cst_26 {dimension_numbers = #tpu.dot_dimension_numbers<[1], [0], [0], [1], [0, 0, 1, 1], [], []>} : vector<8x128xf32>, vector<128x128xf32>, vector<8x128xf32> -> vector<8x128xf32>
    %70 = vector.broadcast %10 : vector<1x128xf32> to vector<8x128xf32>
    %71 = arith.addf %69, %70 : vector<8x128xf32>
    %72 = math.tanh %71 : vector<8x128xf32>
    %c2 = arith.constant 2 : index
    %c0_27 = arith.constant 0 : index
    %c0_28 = arith.constant 0 : index
    %73 = vector.load %arg3[%c2, %c0_27, %c0_28] : memref<3x128x128xf32, #tpu.memory_space<vmem>>, vector<1x128x128xf32>
    %74 = vector.shape_cast %73 : vector<1x128x128xf32> to vector<128x128xf32>
    %cst_29 = arith.constant dense<0.000000e+00> : vector<8x128xf32>
    %75 = tpu.matmul %72, %74, %cst_29 {dimension_numbers = #tpu.dot_dimension_numbers<[1], [0], [0], [1], [0, 0, 1, 1], [], []>} : vector<8x128xf32>, vector<128x128xf32>, vector<8x128xf32> -> vector<8x128xf32>
    %76 = vector.broadcast %11 : vector<1x128xf32> to vector<8x128xf32>
    %77 = arith.addf %75, %76 : vector<8x128xf32>
    %78 = arith.mulf %77, %77 : vector<8x128xf32>
    %cst_30 = arith.constant dense<0.000000e+00> : vector<8xf32>
    %79 = vector.multi_reduction <add>, %78, %cst_30 [1] : vector<8x128xf32> to vector<8xf32>
    %80 = vector.shape_cast %79 : vector<8xf32> to vector<8x1xf32>
    %cst_31 = arith.constant 1.000000e-24 : f32
    %81 = vector.broadcast %cst_31 : f32 to vector<8x1xf32>
    %82 = arith.maximumf %80, %81 : vector<8x1xf32>
    %83 = math.rsqrt %82 : vector<8x1xf32>
    %84 = vector.broadcast %83 : vector<8x1xf32> to vector<8x128xf32>
    %85 = arith.mulf %77, %84 : vector<8x128xf32>
    %86 = tpu.iota {dimensions = array<i32: 1>} : vector<8x128xi32>
    %c32_i32 = arith.constant 32 : i32
    %87 = vector.broadcast %c32_i32 : i32 to vector<8x128xi32>
    %88 = arith.cmpi eq, %86, %87 : vector<8x128xi32>
    %89 = vector.shape_cast %42 : vector<8x1xf32> to vector<8x1xf32>
    %90 = vector.broadcast %89 : vector<8x1xf32> to vector<8x128xf32>
    %91 = arith.select %88, %90, %85 : vector<8x128xi1>, vector<8x128xf32>
    %c33_i32 = arith.constant 33 : i32
    %92 = vector.broadcast %c33_i32 : i32 to vector<8x128xi32>
    %93 = arith.cmpi eq, %86, %92 : vector<8x128xi32>
    %94 = vector.shape_cast %48 : vector<8x1xf32> to vector<8x1xf32>
    %95 = vector.broadcast %94 : vector<8x1xf32> to vector<8x128xf32>
    %96 = arith.select %93, %95, %91 : vector<8x128xi1>, vector<8x128xf32>
    %c0_32 = arith.constant 0 : index
    %c0_33 = arith.constant 0 : index
    %97 = vector.load %arg5[%c0_32, %c0_33] : memref<8x128xf32, #tpu.memory_space<vmem>>, vector<8x128xf32>
    tpu.vector_store %arg5[%c0_32, %c0_33], %96 {strides = array<i32>} : memref<8x128xf32, #tpu.memory_space<vmem>>, vector<8x128xf32>,
    return
  }
}

</mosaic_0001>

<llo_original>
// kernel: tpu_custom_call.1
$region0: #{tpu_custom_call.1}
  #allocation0 [shape = 'u32[]', space=smem, size = 0x4, offset = 0x4, fixed_abs, tag = 'smem constant byte address 0x4 - core index']
  #allocation1 [shape = 'u32[144,128]{1,0:T(1,128)}', space=vmem, size = 0x12000, scoped, tag = 'internal scratch']
  %s0 = inlined_call_operand.hbm [shape: f32[8,128], index: 0, kind: input, shape index: {}]
  %s1 = inlined_call_operand.hbm [shape: bf16[128,1024], index: 1, kind: input, shape index: {}]
  %s2 = inlined_call_operand.hbm [shape: bf16[2,512,384], index: 2, kind: input, shape index: {}]
  %s3 = inlined_call_operand.hbm [shape: f32[3,128,128], index: 3, kind: input, shape index: {}]
  %s4 = inlined_call_operand.hbm [shape: f32[8,1024], index: 4, kind: input, shape index: {}]
  %s5 = inlined_call_operand.hbm [shape: f32[8,128], index: 5, kind: output, shape index: {}]
  %s6 = sld [smem:[#allocation0]]
  $region50: #{tpu_custom_call.1} parent=0
    _
  %s8 = ssub.s32 1, %s6
  %s9 = scalar_select 0, %s8, %s6
  $region1: #{tpu_custom_call.1} parent=0
    #allocation2 [shape = 'u8[4096]{0}', space=vmem, size = 0x1000, scoped, tag = 'input window, operand 0, single buffered']
    #allocation3 [shape = 's32[1]{0}', space=sflag, size = 0x4, scoped, tag = 'scoped memory for tpu_custom_call.1']
    #allocation4 [shape = 's32[1]{0}', space=sflag, size = 0x4, scoped, tag = 'scoped memory for tpu_custom_call.1']
    #allocation5 [shape = 'u8[262144]{0}', space=vmem, size = 0x40000, scoped, tag = 'input window, operand 1, single buffered']
    #allocation6 [shape = 's32[1]{0}', space=sflag, size = 0x4, scoped, tag = 'scoped memory for tpu_custom_call.1']
    #allocation7 [shape = 'u8[786432]{0}', space=vmem, size = 0xc0000, scoped, tag = 'input window, operand 2, single buffered']
    #allocation8 [shape = 'u8[196608]{0}', space=vmem, size = 0x30000, scoped, tag = 'input window, operand 3, single buffered']
    #allocation9 [shape = 's32[1]{0}', space=sflag, size = 0x4, scoped, tag = 'scoped memory for tpu_custom_call.1']
    #allocation10 [shape = 'u8[32768]{0}', space=vmem, size = 0x8000, scoped, tag = 'input window, operand 4, single buffered']
    #allocation11 [shape = 'u8[4096]{0}', space=vmem, size = 0x1000, scoped, tag = 'output window, operand 0, single buffered']
    %10 = vsyncpa [#allocation3], 0
    %11 = vsyncpa [#allocation6], 0
    %12 = vsyncpa [#allocation9], 0
    %13 = vsyncpa [#allocation4], 0
    // Predicated region
    $region2: #{tpu_custom_call.1} parent=1 // pred_check
      _
    $region3: #{tpu_custom_call.1} parent=1 // pred_check_branch
      %15 = sbr.rel (0) target = $region5
    $region4: #{tpu_custom_call.1} parent=1 // pred_region
      %s17 = ssub.s32 128, 128
      %18 = vsyncadd [#allocation3], %s17
      %s20 = sshll.u32 [#allocation2], 4
      %s21 = int_to_ptr.vmem [resolvable:$true] %s20
      %23 = dma.hbm_to_vmem [thread:$0]  %s0, 128, %s21, [#allocation3]
    $region5: #{tpu_custom_call.1} parent=1 // pred_fallthru
      _
    // Predicated region
    $region6: #{tpu_custom_call.1} parent=1 // pred_check
      _
    $region7: #{tpu_custom_call.1} parent=1 // pred_check_branch
      %25 = sbr.rel (0) target = $region9
    $region8: #{tpu_custom_call.1} parent=1 // pred_region
      %s27 = ssub.s32 8192, 8192
      %28 = vsyncadd [#allocation6], %s27
      %s29 = sshll.u32 [#allocation5], 4
      %s30 = int_to_ptr.vmem [resolvable:$true] %s29
      %35 = dma.hbm_to_vmem [thread:$0]  %s1, 8192, %s30, [#allocation6], 512, 512, 32
    $region9: #{tpu_custom_call.1} parent=1 // pred_fallthru
      _
    // Predicated region
    $region10: #{tpu_custom_call.1} parent=1 // pred_check
      _
    $region11: #{tpu_custom_call.1} parent=1 // pred_check_branch
      %37 = sbr.rel (0) target = $region13
    $region12: #{tpu_custom_call.1} parent=1 // pred_region
      %s39 = ssub.s32 24576, 24576
      %40 = vsyncadd [#allocation6], %s39
      %s41 = sshll.u32 [#allocation7], 4
      %s42 = int_to_ptr.vmem [resolvable:$true] %s41
      %47 = dma.hbm_to_vmem [thread:$0]  %s2, 24576, %s42, [#allocation6], 192, 192, 12
    $region13: #{tpu_custom_call.1} parent=1 // pred_fallthru
      _
    // Predicated region
    $region14: #{tpu_custom_call.1} parent=1 // pred_check
      _
    $region15: #{tpu_custom_call.1} parent=1 // pred_check_branch
      %49 = sbr.rel (0) target = $region17
    $region16: #{tpu_custom_call.1} parent=1 // pred_region
      %s51 = ssub.s32 6144, 6144
      %52 = vsyncadd [#allocation9], %s51
      %s53 = sshll.u32 [#allocation8], 4
      %s54 = int_to_ptr.vmem [resolvable:$true] %s53
      %59 = dma.hbm_to_vmem [thread:$0]  %s3, 6144, %s54, [#allocation9], 128, 128, 8
    $region17: #{tpu_custom_call.1} parent=1 // pred_fallthru
      _
    // Predicated region
    $region18: #{tpu_custom_call.1} parent=1 // pred_check
      _
    $region19: #{tpu_custom_call.1} parent=1 // pred_check_branch
      %61 = sbr.rel (0) target = $region21
    $region20: #{tpu_custom_call.1} parent=1 // pred_region
      %s63 = ssub.s32 1024, 1024
      %64 = vsyncadd [#allocation9], %s63
      %s66 = sshll.u32 [#allocation10], 4
      %s67 = int_to_ptr.vmem [resolvable:$true] %s66
      %69 = dma.hbm_to_vmem [thread:$0]  %s4, 1024, %s67, [#allocation9]
    $region21: #{tpu_custom_call.1} parent=1 // pred_fallthru
      _
    // Predicated region
    $region22: #{tpu_custom_call.1} parent=1 // pred_check
      _
    $region23: #{tpu_custom_call.1} parent=1 // pred_check_branch
      %71 = sbr.rel (0) target = $region25
    $region24: #{tpu_custom_call.1} parent=1 // pred_region
      %72 = dma.done [#allocation3], 128
    $region25: #{tpu_custom_call.1} parent=1 // pred_fallthru
      _
    // Predicated region
    $region26: #{tpu_custom_call.1} parent=1 // pred_check
      _
    $region27: #{tpu_custom_call.1} parent=1 // pred_check_branch
      %74 = sbr.rel (0) target = $region29
    $region28: #{tpu_custom_call.1} parent=1 // pred_region
      %75 = dma.done [#allocation6], 8192
    $region29: #{tpu_custom_call.1} parent=1 // pred_fallthru
      _
    // Predicated region
    $region30: #{tpu_custom_call.1} parent=1 // pred_check
      _
    $region31: #{tpu_custom_call.1} parent=1 // pred_check_branch
      %77 = sbr.rel (0) target = $region33
    $region32: #{tpu_custom_call.1} parent=1 // pred_region
      %78 = dma.done [#allocation6], 24576
    $region33: #{tpu_custom_call.1} parent=1 // pred_fallthru
      _
    // Predicated region
    $region34: #{tpu_custom_call.1} parent=1 // pred_check
      _
    $region35: #{tpu_custom_call.1} parent=1 // pred_check_branch
      %80 = sbr.rel (0) target = $region37
    $region36: #{tpu_custom_call.1} parent=1 // pred_region
      %81 = dma.done [#allocation9], 6144
    $region37: #{tpu_custom_call.1} parent=1 // pred_fallthru
      _
    // Predicated region
    $region38: #{tpu_custom_call.1} parent=1 // pred_check
      _
    $region39: #{tpu_custom_call.1} parent=1 // pred_check_branch
      %83 = sbr.rel (0) target = $region41
    $region40: #{tpu_custom_call.1} parent=1 // pred_region
      %84 = dma.done [#allocation9], 1024
    $region41: #{tpu_custom_call.1} parent=1 // pred_fallthru
      _
    %v86 = vld [vmem:[#allocation2] sm:$0xff]
    %v87 = vld [vmem:[#allocation10] sm:$0xff]
    %v88 = vld [vmem:[#allocation10 + $0x8] sm:$0xff]
    %v89 = vld [vmem:[#allocation10 + $0x10] sm:$0xff]
    %v90 = vld [vmem:[#allocation10 + $0x18] sm:$0xff]
    %v91 = vld [vmem:[#allocation10 + $0x20] sm:$0xff]
    %v92 = vld [vmem:[#allocation10 + $0x28] sm:$0xff]
    %v93 = vld [vmem:[#allocation10 + $0x30] sm:$0xff]
    %v94 = vld [vmem:[#allocation10 + $0x38] sm:$0xff]
    %v95 = vpack.c.bf16 %v86, %v86
    %v96 = vld [vmem:[#allocation5] sm:$0xff]
    %v97 = vld [vmem:[#allocation5 + $0x8] sm:$0xff]
    %v98 = vld [vmem:[#allocation5 + $0x10] sm:$0xff]
    %v99 = vld [vmem:[#allocation5 + $0x18] sm:$0xff]
    %v100 = vld [vmem:[#allocation5 + $0x20] sm:$0xff]
    %v101 = vld [vmem:[#allocation5 + $0x28] sm:$0xff]
    %v102 = vld [vmem:[#allocation5 + $0x30] sm:$0xff]
    %v103 = vld [vmem:[#allocation5 + $0x38] sm:$0xff]
    %v104 = vld [vmem:[#allocation5 + $0x40] sm:$0xff]
    %v105 = vld [vmem:[#allocation5 + $0x48] sm:$0xff]
    %v106 = vld [vmem:[#allocation5 + $0x50] sm:$0xff]
    %v107 = vld [vmem:[#allocation5 + $0x58] sm:$0xff]
    %v108 = vld [vmem:[#allocation5 + $0x60] sm:$0xff]
    %v109 = vld [vmem:[#allocation5 + $0x68] sm:$0xff]
    %v110 = vld [vmem:[#allocation5 + $0x70] sm:$0xff]
    %v111 = vld [vmem:[#allocation5 + $0x78] sm:$0xff]
    %v112 = vld [vmem:[#allocation5 + $0x80] sm:$0xff]
    %v113 = vld [vmem:[#allocation5 + $0x88] sm:$0xff]
    %v114 = vld [vmem:[#allocation5 + $0x90] sm:$0xff]
    %v115 = vld [vmem:[#allocation5 + $0x98] sm:$0xff]
    %v116 = vld [vmem:[#allocation5 + $0xa0] sm:$0xff]
    %v117 = vld [vmem:[#allocation5 + $0xa8] sm:$0xff]
    %v118 = vld [vmem:[#allocation5 + $0xb0] sm:$0xff]
    %v119 = vld [vmem:[#allocation5 + $0xb8] sm:$0xff]
    %v120 = vld [vmem:[#allocation5 + $0xc0] sm:$0xff]
    %v121 = vld [vmem:[#allocation5 + $0xc8] sm:$0xff]
    %v122 = vld [vmem:[#allocation5 + $0xd0] sm:$0xff]
    %v123 = vld [vmem:[#allocation5 + $0xd8] sm:$0xff]
    %v124 = vld [vmem:[#allocation5 + $0xe0] sm:$0xff]
    %v125 = vld [vmem:[#allocation5 + $0xe8] sm:$0xff]
    %v126 = vld [vmem:[#allocation5 + $0xf0] sm:$0xff]
    %v127 = vld [vmem:[#allocation5 + $0xf8] sm:$0xff]
    %v128 = vld [vmem:[#allocation5 + $0x100] sm:$0xff]
    %v129 = vld [vmem:[#allocation5 + $0x108] sm:$0xff]
    %v130 = vld [vmem:[#allocation5 + $0x110] sm:$0xff]
    %v131 = vld [vmem:[#allocation5 + $0x118] sm:$0xff]
    %v132 = vld [vmem:[#allocation5 + $0x120] sm:$0xff]
    %v133 = vld [vmem:[#allocation5 + $0x128] sm:$0xff]
    %v134 = vld [vmem:[#allocation5 + $0x130] sm:$0xff]
    %v135 = vld [vmem:[#allocation5 + $0x138] sm:$0xff]
    %v136 = vld [vmem:[#allocation5 + $0x140] sm:$0xff]
    %v137 = vld [vmem:[#allocation5 + $0x148] sm:$0xff]
    %v138 = vld [vmem:[#allocation5 + $0x150] sm:$0xff]
    %v139 = vld [vmem:[#allocation5 + $0x158] sm:$0xff]
    %v140 = vld [vmem:[#allocation5 + $0x160] sm:$0xff]
    %v141 = vld [vmem:[#allocation5 + $0x168] sm:$0xff]
    %v142 = vld [vmem:[#allocation5 + $0x170] sm:$0xff]
    %v143 = vld [vmem:[#allocation5 + $0x178] sm:$0xff]
    %v144 = vld [vmem:[#allocation5 + $0x180] sm:$0xff]
    %v145 = vld [vmem:[#allocation5 + $0x188] sm:$0xff]
    %v146 = vld [vmem:[#allocation5 + $0x190] sm:$0xff]
    %v147 = vld [vmem:[#allocation5 + $0x198] sm:$0xff]
    %v148 = vld [vmem:[#allocation5 + $0x1a0] sm:$0xff]
    %v149 = vld [vmem:[#allocation5 + $0x1a8] sm:$0xff]
    %v150 = vld [vmem:[#allocation5 + $0x1b0] sm:$0xff]
    %v151 = vld [vmem:[#allocation5 + $0x1b8] sm:$0xff]
    %v152 = vld [vmem:[#allocation5 + $0x1c0] sm:$0xff]
    %v153 = vld [vmem:[#allocation5 + $0x1c8] sm:$0xff]
    %v154 = vld [vmem:[#allocation5 + $0x1d0] sm:$0xff]
    %v155 = vld [vmem:[#allocation5 + $0x1d8] sm:$0xff]
    %v156 = vld [vmem:[#allocation5 + $0x1e0] sm:$0xff]
    %v157 = vld [vmem:[#allocation5 + $0x1e8] sm:$0xff]
    %v158 = vld [vmem:[#allocation5 + $0x1f0] sm:$0xff]
    %v159 = vld [vmem:[#allocation5 + $0x1f8] sm:$0xff]
    %v160 = vlaneseq
    %v161 = vshrl.u32 %v160, 7
    %v162 = vsub.s32 0, %v161
    %v163 = vrot.slane %v87, %v162
    %v164 = vlaneseq
    %v165 = vshrl.u32 %v164, 7
    %v166 = vsub.s32 0, %v165
    %v167 = vrot.slane %v88, %v166
    %v168 = vlaneseq
    %v169 = vshrl.u32 %v168, 7
    %v170 = vsub.s32 0, %v169
    %v171 = vrot.slane %v89, %v170
    %v172 = vlaneseq
    %v173 = vshrl.u32 %v172, 7
    %v174 = vsub.s32 0, %v173
    %v175 = vrot.slane %v90, %v174
    %v176 = vlaneseq
    %v177 = vshrl.u32 %v176, 7
    %v178 = vsub.s32 0, %v177
    %v179 = vrot.slane %v91, %v178
    %v180 = vlaneseq
    %v181 = vshrl.u32 %v180, 7
    %v182 = vsub.s32 0, %v181
    %v183 = vrot.slane %v92, %v182
    %v184 = vlaneseq
    %v185 = vshrl.u32 %v184, 7
    %v186 = vsub.s32 0, %v185
    %v187 = vrot.slane %v93, %v186
    %v188 = vlaneseq
    %v189 = vshrl.u32 %v188, 7
    %v190 = vsub.s32 0, %v189
    %v191 = vrot.slane %v94, %v190
    %v256 = vunpack.c.l.b16 %v96
    %v257 = vunpack.c.h.b16 %v96
    %v258 = vunpack.c.l.b16 %v97
    %v259 = vunpack.c.h.b16 %v97
    %v260 = vunpack.c.l.b16 %v98
    %v261 = vunpack.c.h.b16 %v98
    %v262 = vunpack.c.l.b16 %v99
    %v263 = vunpack.c.h.b16 %v99
    %v264 = vunpack.c.l.b16 %v100
    %v265 = vunpack.c.h.b16 %v100
    %v266 = vunpack.c.l.b16 %v101
    %v267 = vunpack.c.h.b16 %v101
    %v268 = vunpack.c.l.b16 %v102
    %v269 = vunpack.c.h.b16 %v102
    %v270 = vunpack.c.l.b16 %v103
    %v271 = vunpack.c.h.b16 %v103
    %v272 = vunpack.c.l.b16 %v104
    %v273 = vunpack.c.h.b16 %v104
    %v274 = vunpack.c.l.b16 %v105
    %v275 = vunpack.c.h.b16 %v105
    %v276 = vunpack.c.l.b16 %v106
    %v277 = vunpack.c.h.b16 %v106
    %v278 = vunpack.c.l.b16 %v107
    %v279 = vunpack.c.h.b16 %v107
    %v280 = vunpack.c.l.b16 %v108
    %v281 = vunpack.c.h.b16 %v108
    %v282 = vunpack.c.l.b16 %v109
    %v283 = vunpack.c.h.b16 %v109
    %v284 = vunpack.c.l.b16 %v110
    %v285 = vunpack.c.h.b16 %v110
    %v286 = vunpack.c.l.b16 %v111
    %v287 = vunpack.c.h.b16 %v111
    %v288 = vunpack.c.l.b16 %v112
    %v289 = vunpack.c.h.b16 %v112
    %v290 = vunpack.c.l.b16 %v113
    %v291 = vunpack.c.h.b16 %v113
    %v292 = vunpack.c.l.b16 %v114
    %v293 = vunpack.c.h.b16 %v114
    %v294 = vunpack.c.l.b16 %v115
    %v295 = vunpack.c.h.b16 %v115
    %v296 = vunpack.c.l.b16 %v116
    %v297 = vunpack.c.h.b16 %v116
    %v298 = vunpack.c.l.b16 %v117
    %v299 = vunpack.c.h.b16 %v117
    %v300 = vunpack.c.l.b16 %v118
    %v301 = vunpack.c.h.b16 %v118
    %v302 = vunpack.c.l.b16 %v119
    %v303 = vunpack.c.h.b16 %v119
    %v304 = vunpack.c.l.b16 %v120
    %v305 = vunpack.c.h.b16 %v120
    %v306 = vunpack.c.l.b16 %v121
    %v307 = vunpack.c.h.b16 %v121
    %v308 = vunpack.c.l.b16 %v122
    %v309 = vunpack.c.h.b16 %v122
    %v310 = vunpack.c.l.b16 %v123
    %v311 = vunpack.c.h.b16 %v123
    %v312 = vunpack.c.l.b16 %v124
    %v313 = vunpack.c.h.b16 %v124
    %v314 = vunpack.c.l.b16 %v125
    %v315 = vunpack.c.h.b16 %v125
    %v316 = vunpack.c.l.b16 %v126
    %v317 = vunpack.c.h.b16 %v126
    %v318 = vunpack.c.l.b16 %v127
    %v319 = vunpack.c.h.b16 %v127
    %v320 = vunpack.c.l.b16 %v128
    %v321 = vunpack.c.h.b16 %v128
    %v322 = vunpack.c.l.b16 %v129
    %v323 = vunpack.c.h.b16 %v129
    %v324 = vunpack.c.l.b16 %v130
    %v325 = vunpack.c.h.b16 %v130
    %v326 = vunpack.c.l.b16 %v131
    %v327 = vunpack.c.h.b16 %v131
    %v328 = vunpack.c.l.b16 %v132
    %v329 = vunpack.c.h.b16 %v132
    %v330 = vunpack.c.l.b16 %v133
    %v331 = vunpack.c.h.b16 %v133
    %v332 = vunpack.c.l.b16 %v134
    %v333 = vunpack.c.h.b16 %v134
    %v334 = vunpack.c.l.b16 %v135
    %v335 = vunpack.c.h.b16 %v135
    %v336 = vunpack.c.l.b16 %v136
    %v337 = vunpack.c.h.b16 %v136
    %v338 = vunpack.c.l.b16 %v137
    %v339 = vunpack.c.h.b16 %v137
    %v340 = vunpack.c.l.b16 %v138
    %v341 = vunpack.c.h.b16 %v138
    %v342 = vunpack.c.l.b16 %v139
    %v343 = vunpack.c.h.b16 %v139
    %v344 = vunpack.c.l.b16 %v140
    %v345 = vunpack.c.h.b16 %v140
    %v346 = vunpack.c.l.b16 %v141
    %v347 = vunpack.c.h.b16 %v141
    %v348 = vunpack.c.l.b16 %v142
    %v349 = vunpack.c.h.b16 %v142
    %v350 = vunpack.c.l.b16 %v143
    %v351 = vunpack.c.h.b16 %v143
    %v352 = vunpack.c.l.b16 %v144
    %v353 = vunpack.c.h.b16 %v144
    %v354 = vunpack.c.l.b16 %v145
    %v355 = vunpack.c.h.b16 %v145
    %v356 = vunpack.c.l.b16 %v146
    %v357 = vunpack.c.h.b16 %v146
    %v358 = vunpack.c.l.b16 %v147
    %v359 = vunpack.c.h.b16 %v147
    %v360 = vunpack.c.l.b16 %v148
    %v361 = vunpack.c.h.b16 %v148
    %v362 = vunpack.c.l.b16 %v149
    %v363 = vunpack.c.h.b16 %v149
    %v364 = vunpack.c.l.b16 %v150
    %v365 = vunpack.c.h.b16 %v150
    %v366 = vunpack.c.l.b16 %v151
    %v367 = vunpack.c.h.b16 %v151
    %v368 = vunpack.c.l.b16 %v152
    %v369 = vunpack.c.h.b16 %v152
    %v370 = vunpack.c.l.b16 %v153
    %v371 = vunpack.c.h.b16 %v153
    %v372 = vunpack.c.l.b16 %v154
    %v373 = vunpack.c.h.b16 %v154
    %v374 = vunpack.c.l.b16 %v155
    %v375 = vunpack.c.h.b16 %v155
    %v376 = vunpack.c.l.b16 %v156
    %v377 = vunpack.c.h.b16 %v156
    %v378 = vunpack.c.l.b16 %v157
    %v379 = vunpack.c.h.b16 %v157
    %v380 = vunpack.c.l.b16 %v158
    %v381 = vunpack.c.h.b16 %v158
    %v382 = vunpack.c.l.b16 %v159
    %v383 = vunpack.c.h.b16 %v159
    %v384 = vpack.c.b16 %v264, %v256
    %v385 = vpack.c.b16 %v265, %v257
    %v386 = vpack.c.b16 %v266, %v258
    %v387 = vpack.c.b16 %v267, %v259
    %v388 = vpack.c.b16 %v268, %v260
    %v389 = vpack.c.b16 %v269, %v261
    %v390 = vpack.c.b16 %v270, %v262
    %v391 = vpack.c.b16 %v271, %v263
    %v392 = vpack.c.b16 %v280, %v272
    %v393 = vpack.c.b16 %v281, %v273
    %v394 = vpack.c.b16 %v282, %v274
    %v395 = vpack.c.b16 %v283, %v275
    %v396 = vpack.c.b16 %v284, %v276
    %v397 = vpack.c.b16 %v285, %v277
    %v398 = vpack.c.b16 %v286, %v278
    %v399 = vpack.c.b16 %v287, %v279
    %v400 = vpack.c.b16 %v296, %v288
    %v401 = vpack.c.b16 %v297, %v289
    %v402 = vpack.c.b16 %v298, %v290
    %v403 = vpack.c.b16 %v299, %v291
    %v404 = vpack.c.b16 %v300, %v292
    %v405 = vpack.c.b16 %v301, %v293
    %v406 = vpack.c.b16 %v302, %v294
    %v407 = vpack.c.b16 %v303, %v295
    %v408 = vpack.c.b16 %v312, %v304
    %v409 = vpack.c.b16 %v313, %v305
    %v410 = vpack.c.b16 %v314, %v306
    %v411 = vpack.c.b16 %v315, %v307
    %v412 = vpack.c.b16 %v316, %v308
    %v413 = vpack.c.b16 %v317, %v309
    %v414 = vpack.c.b16 %v318, %v310
    %v415 = vpack.c.b16 %v319, %v311
    %v416 = vpack.c.b16 %v328, %v320
    %v417 = vpack.c.b16 %v329, %v321
    %v418 = vpack.c.b16 %v330, %v322
    %v419 = vpack.c.b16 %v331, %v323
    %v420 = vpack.c.b16 %v332, %v324
    %v421 = vpack.c.b16 %v333, %v325
    %v422 = vpack.c.b16 %v334, %v326
    %v423 = vpack.c.b16 %v335, %v327
    %v424 = vpack.c.b16 %v344, %v336
    %v425 = vpack.c.b16 %v345, %v337
    %v426 = vpack.c.b16 %v346, %v338
    %v427 = vpack.c.b16 %v347, %v339
    %v428 = vpack.c.b16 %v348, %v340
    %v429 = vpack.c.b16 %v349, %v341
    %v430 = vpack.c.b16 %v350, %v342
    %v431 = vpack.c.b16 %v351, %v343
    %v432 = vpack.c.b16 %v360, %v352
    %v433 = vpack.c.b16 %v361, %v353
    %v434 = vpack.c.b16 %v362, %v354
    %v435 = vpack.c.b16 %v363, %v355
    %v436 = vpack.c.b16 %v364, %v356
    %v437 = vpack.c.b16 %v365, %v357
    %v438 = vpack.c.b16 %v366, %v358
    %v439 = vpack.c.b16 %v367, %v359
    %v440 = vpack.c.b16 %v376, %v368
    %v441 = vpack.c.b16 %v377, %v369
    %v442 = vpack.c.b16 %v378, %v370
    %v443 = vpack.c.b16 %v379, %v371
    %v444 = vpack.c.b16 %v380, %v372
    %v445 = vpack.c.b16 %v381, %v373
    %v446 = vpack.c.b16 %v382, %v374
    %v447 = vpack.c.b16 %v383, %v375
    %512 = vmatprep.subr.bf16.mxu0 %v385
    %513 = vmatpush1.bf16.msra.mxu0 %v384
    %514 = vmatprep.subr.bf16.mxu0 %v393
    %515 = vmatpush1.bf16.msra.mxu0 %v392
    %516 = vmatprep.subr.bf16.mxu0 %v401
    %517 = vmatpush1.bf16.msra.mxu0 %v400
    %518 = vmatprep.subr.bf16.mxu0 %v409
    %519 = vmatpush1.bf16.msra.mxu0 %v408
    %520 = vmatprep.subr.bf16.mxu0 %v417
    %521 = vmatpush1.bf16.msra.mxu0 %v416
    %522 = vmatprep.subr.bf16.mxu0 %v425
    %523 = vmatpush1.bf16.msra.mxu0 %v424
    %524 = vmatprep.subr.bf16.mxu0 %v433
    %525 = vmatpush1.bf16.msra.mxu0 %v432
    %526 = vmatprep.subr.bf16.mxu0 %v441
    %527 = vmatpush1.bf16.msra.mxu0 %v440
    %528 = vmatprep.subr.bf16.mxu0 0
    %529 = vmatpush1.bf16.msra.mxu0 0
    %530 = vmatprep.subr.bf16.mxu0 0
    %531 = vmatpush1.bf16.msra.mxu0 0
    %532 = vmatprep.subr.bf16.mxu0 0
    %533 = vmatpush1.bf16.msra.mxu0 0
    %534 = vmatprep.subr.bf16.mxu0 0
    %535 = vmatpush1.bf16.msra.mxu0 0
    %536 = vmatprep.subr.bf16.mxu0 0
    %537 = vmatpush1.bf16.msra.mxu0 0
    %538 = vmatprep.subr.bf16.mxu0 0
    %539 = vmatpush1.bf16.msra.mxu0 0
    %540 = vmatprep.subr.bf16.mxu0 0
    %541 = vmatpush1.bf16.msra.mxu0 0
    %542 = vmatprep.subr.bf16.mxu0 0
    %543 = vmatpush1.bf16.msra.mxu0 0
    %544 = vmatprep.mubr.bf16.mxu0 0
    %545 = vmatmul.mubr.bf16.gmra.mrb[0].mxu0 %v95
    %v546 = vpop.f32.mrb[0].mxu0
    %v547 = vadd.f32 %v163, %v546
    %v548 = vpop.f32.mrb[0].mxu0
    %v549 = vadd.f32 %v167, %v548
    %v550 = vpop.f32.mrb[0].mxu0
    %v551 = vpop.f32.mrb[0].mxu0
    %552 = vdwg.mxu0
    %553 = vmatprep.subr.bf16.mxu0 %v387
    %554 = vmatpush1.bf16.msra.mxu0 %v386
    %555 = vmatprep.subr.bf16.mxu0 %v395
    %556 = vmatpush1.bf16.msra.mxu0 %v394
    %557 = vmatprep.subr.bf16.mxu0 %v403
    %558 = vmatpush1.bf16.msra.mxu0 %v402
    %559 = vmatprep.subr.bf16.mxu0 %v411
    %560 = vmatpush1.bf16.msra.mxu0 %v410
    %561 = vmatprep.subr.bf16.mxu0 %v419
    %562 = vmatpush1.bf16.msra.mxu0 %v418
    %563 = vmatprep.subr.bf16.mxu0 %v427
    %564 = vmatpush1.bf16.msra.mxu0 %v426
    %565 = vmatprep.subr.bf16.mxu0 %v435
    %566 = vmatpush1.bf16.msra.mxu0 %v434
    %567 = vmatprep.subr.bf16.mxu0 %v443
    %568 = vmatpush1.bf16.msra.mxu0 %v442
    %569 = vmatprep.subr.bf16.mxu0 0
    %570 = vmatpush1.bf16.msra.mxu0 0
    %571 = vmatprep.subr.bf16.mxu0 0
    %572 = vmatpush1.bf16.msra.mxu0 0
    %573 = vmatprep.subr.bf16.mxu0 0
    %574 = vmatpush1.bf16.msra.mxu0 0
    %575 = vmatprep.subr.bf16.mxu0 0
    %576 = vmatpush1.bf16.msra.mxu0 0
    %577 = vmatprep.subr.bf16.mxu0 0
    %578 = vmatpush1.bf16.msra.mxu0 0
    %579 = vmatprep.subr.bf16.mxu0 0
    %580 = vmatpush1.bf16.msra.mxu0 0
    %581 = vmatprep.subr.bf16.mxu0 0
    %582 = vmatpush1.bf16.msra.mxu0 0
    %583 = vmatprep.subr.bf16.mxu0 0
    %584 = vmatpush1.bf16.msra.mxu0 0
    %585 = vmatprep.mubr.bf16.mxu0 0
    %586 = vmatmul.mubr.bf16.gmra.mrb[0].mxu0 %v95
    %v587 = vpop.f32.mrb[0].mxu0
    %v588 = vadd.f32 %v171, %v587
    %v589 = vpop.f32.mrb[0].mxu0
    %v590 = vadd.f32 %v175, %v589
    %v591 = vpop.f32.mrb[0].mxu0
    %v592 = vpop.f32.mrb[0].mxu0
    %593 = vdwg.mxu0
    %594 = vmatprep.subr.bf16.mxu0 %v389
    %595 = vmatpush1.bf16.msra.mxu0 %v388
    %596 = vmatprep.subr.bf16.mxu0 %v397
    %597 = vmatpush1.bf16.msra.mxu0 %v396
    %598 = vmatprep.subr.bf16.mxu0 %v405
    %599 = vmatpush1.bf16.msra.mxu0 %v404
    %600 = vmatprep.subr.bf16.mxu0 %v413
    %601 = vmatpush1.bf16.msra.mxu0 %v412
    %602 = vmatprep.subr.bf16.mxu0 %v421
    %603 = vmatpush1.bf16.msra.mxu0 %v420
    %604 = vmatprep.subr.bf16.mxu0 %v429
    %605 = vmatpush1.bf16.msra.mxu0 %v428
    %606 = vmatprep.subr.bf16.mxu0 %v437
    %607 = vmatpush1.bf16.msra.mxu0 %v436
    %608 = vmatprep.subr.bf16.mxu0 %v445
    %609 = vmatpush1.bf16.msra.mxu0 %v444
    %610 = vmatprep.subr.bf16.mxu0 0
    %611 = vmatpush1.bf16.msra.mxu0 0
    %612 = vmatprep.subr.bf16.mxu0 0
    %613 = vmatpush1.bf16.msra.mxu0 0
    %614 = vmatprep.subr.bf16.mxu0 0
    %615 = vmatpush1.bf16.msra.mxu0 0
    %616 = vmatprep.subr.bf16.mxu0 0
    %617 = vmatpush1.bf16.msra.mxu0 0
    %618 = vmatprep.subr.bf16.mxu0 0
    %619 = vmatpush1.bf16.msra.mxu0 0
    %620 = vmatprep.subr.bf16.mxu0 0
    %621 = vmatpush1.bf16.msra.mxu0 0
    %622 = vmatprep.subr.bf16.mxu0 0
    %623 = vmatpush1.bf16.msra.mxu0 0
    %624 = vmatprep.subr.bf16.mxu0 0
    %625 = vmatpush1.bf16.msra.mxu0 0
    %626 = vmatprep.mubr.bf16.mxu0 0
    %627 = vmatmul.mubr.bf16.gmra.mrb[0].mxu0 %v95
    %v628 = vpop.f32.mrb[0].mxu0
    %v629 = vadd.f32 %v179, %v628
    %v630 = vpop.f32.mrb[0].mxu0
    %v631 = vadd.f32 %v183, %v630
    %v632 = vpop.f32.mrb[0].mxu0
    %v633 = vpop.f32.mrb[0].mxu0
    %634 = vdwg.mxu0
    %635 = vmatprep.subr.bf16.mxu0 %v391
    %636 = vmatpush1.bf16.msra.mxu0 %v390
    %637 = vmatprep.subr.bf16.mxu0 %v399
    %638 = vmatpush1.bf16.msra.mxu0 %v398
    %639 = vmatprep.subr.bf16.mxu0 %v407
    %640 = vmatpush1.bf16.msra.mxu0 %v406
    %641 = vmatprep.subr.bf16.mxu0 %v415
    %642 = vmatpush1.bf16.msra.mxu0 %v414
    %643 = vmatprep.subr.bf16.mxu0 %v423
    %644 = vmatpush1.bf16.msra.mxu0 %v422
    %645 = vmatprep.subr.bf16.mxu0 %v431
    %646 = vmatpush1.bf16.msra.mxu0 %v430
    %647 = vmatprep.subr.bf16.mxu0 %v439
    %648 = vmatpush1.bf16.msra.mxu0 %v438
    %649 = vmatprep.subr.bf16.mxu0 %v447
    %650 = vmatpush1.bf16.msra.mxu0 %v446
    %651 = vmatprep.subr.bf16.mxu0 0
    %652 = vmatpush1.bf16.msra.mxu0 0
    %653 = vmatprep.subr.bf16.mxu0 0
    %654 = vmatpush1.bf16.msra.mxu0 0
    %655 = vmatprep.subr.bf16.mxu0 0
    %656 = vmatpush1.bf16.msra.mxu0 0
    %657 = vmatprep.subr.bf16.mxu0 0
    %658 = vmatpush1.bf16.msra.mxu0 0
    %659 = vmatprep.subr.bf16.mxu0 0
    %660 = vmatpush1.bf16.msra.mxu0 0
    %661 = vmatprep.subr.bf16.mxu0 0
    %662 = vmatpush1.bf16.msra.mxu0 0
    %663 = vmatprep.subr.bf16.mxu0 0
    %664 = vmatpush1.bf16.msra.mxu0 0
    %665 = vmatprep.subr.bf16.mxu0 0
    %666 = vmatpush1.bf16.msra.mxu0 0
    %667 = vmatprep.mubr.bf16.mxu0 0
    %668 = vmatmul.mubr.bf16.gmra.mrb[0].mxu0 %v95
    %v669 = vpop.f32.mrb[0].mxu0
    %v670 = vadd.f32 %v187, %v669
    %v671 = vpop.f32.mrb[0].mxu0
    %v672 = vadd.f32 %v191, %v671
    %v673 = vpop.f32.mrb[0].mxu0
    %v674 = vpop.f32.mrb[0].mxu0
    %675 = vdwg.mxu0
    %v676 = vmax.f32 %v547, 0.0
    %v677 = vmax.f32 %v549, 0.0
    %v678 = vmax.f32 %v588, 0.0
    %v679 = vmax.f32 %v590, 0.0
    %v680 = vmax.f32 %v629, 0.0
    %v681 = vmax.f32 %v631, 0.0
    %v682 = vmax.f32 %v670, 0.0
    %v683 = vmax.f32 %v672, 0.0
    %v684 = vpack.c.bf16 %v676, %v676
    %v685 = vpack.c.bf16 %v677, %v677
    %v686 = vpack.c.bf16 %v678, %v678
    %v687 = vpack.c.bf16 %v679, %v679
    %v688 = vld [vmem:[#allocation7] sm:$0xff]
    %v689 = vld [vmem:[#allocation7 + $0x8] sm:$0xf]
    %v690 = vld [vmem:[#allocation7 + $0xc] sm:$0xff]
    %v691 = vld [vmem:[#allocation7 + $0x14] sm:$0xf]
    %v692 = vld [vmem:[#allocation7 + $0x18] sm:$0xff]
    %v693 = vld [vmem:[#allocation7 + $0x20] sm:$0xf]
    %v694 = vld [vmem:[#allocation7 + $0x24] sm:$0xff]
    %v695 = vld [vmem:[#allocation7 + $0x2c] sm:$0xf]
    %v696 = vld [vmem:[#allocation7 + $0x30] sm:$0xff]
    %v697 = vld [vmem:[#allocation7 + $0x38] sm:$0xf]
    %v698 = vld [vmem:[#allocation7 + $0x3c] sm:$0xff]
    %v699 = vld [vmem:[#allocation7 + $0x44] sm:$0xf]
    %v700 = vld [vmem:[#allocation7 + $0x48] sm:$0xff]
    %v701 = vld [vmem:[#allocation7 + $0x50] sm:$0xf]
    %v702 = vld [vmem:[#allocation7 + $0x54] sm:$0xff]
    %v703 = vld [vmem:[#allocation7 + $0x5c] sm:$0xf]
    %v704 = vld [vmem:[#allocation7 + $0x60] sm:$0xff]
    %v705 = vld [vmem:[#allocation7 + $0x68] sm:$0xf]
    %v706 = vld [vmem:[#allocation7 + $0x6c] sm:$0xff]
    %v707 = vld [vmem:[#allocation7 + $0x74] sm:$0xf]
    %v708 = vld [vmem:[#allocation7 + $0x78] sm:$0xff]
    %v709 = vld [vmem:[#allocation7 + $0x80] sm:$0xf]
    %v710 = vld [vmem:[#allocation7 + $0x84] sm:$0xff]
    %v711 = vld [vmem:[#allocation7 + $0x8c] sm:$0xf]
    %v712 = vld [vmem:[#allocation7 + $0x90] sm:$0xff]
    %v713 = vld [vmem:[#allocation7 + $0x98] sm:$0xf]
    %v714 = vld [vmem:[#allocation7 + $0x9c] sm:$0xff]
    %v715 = vld [vmem:[#allocation7 + $0xa4] sm:$0xf]
    %v716 = vld [vmem:[#allocation7 + $0xa8] sm:$0xff]
    %v717 = vld [vmem:[#allocation7 + $0xb0] sm:$0xf]
    %v718 = vld [vmem:[#allocation7 + $0xb4] sm:$0xff]
    %v719 = vld [vmem:[#allocation7 + $0xbc] sm:$0xf]
    %v720 = vld [vmem:[#allocation7 + $0xc0] sm:$0xff]
    %v721 = vld [vmem:[#allocation7 + $0xc8] sm:$0xf]
    %v722 = vld [vmem:[#allocation7 + $0xcc] sm:$0xff]
    %v723 = vld [vmem:[#allocation7 + $0xd4] sm:$0xf]
    %v724 = vld [vmem:[#allocation7 + $0xd8] sm:$0xff]
    %v725 = vld [vmem:[#allocation7 + $0xe0] sm:$0xf]
    %v726 = vld [vmem:[#allocation7 + $0xe4] sm:$0xff]
    %v727 = vld [vmem:[#allocation7 + $0xec] sm:$0xf]
    %v728 = vld [vmem:[#allocation7 + $0xf0] sm:$0xff]
    %v729 = vld [vmem:[#allocation7 + $0xf8] sm:$0xf]
    %v730 = vld [vmem:[#allocation7 + $0xfc] sm:$0xff]
    %v731 = vld [vmem:[#allocation7 + $0x104] sm:$0xf]
    %v732 = vld [vmem:[#allocation7 + $0x108] sm:$0xff]
    %v733 = vld [vmem:[#allocation7 + $0x110] sm:$0xf]
    %v734 = vld [vmem:[#allocation7 + $0x114] sm:$0xff]
    %v735 = vld [vmem:[#allocation7 + $0x11c] sm:$0xf]
    %v736 = vld [vmem:[#allocation7 + $0x120] sm:$0xff]
    %v737 = vld [vmem:[#allocation7 + $0x128] sm:$0xf]
    %v738 = vld [vmem:[#allocation7 + $0x12c] sm:$0xff]
    %v739 = vld [vmem:[#allocation7 + $0x134] sm:$0xf]
    %v740 = vld [vmem:[#allocation7 + $0x138] sm:$0xff]
    %v741 = vld [vmem:[#allocation7 + $0x140] sm:$0xf]
    %v742 = vld [vmem:[#allocation7 + $0x144] sm:$0xff]
    %v743 = vld [vmem:[#allocation7 + $0x14c] sm:$0xf]
    %v744 = vld [vmem:[#allocation7 + $0x150] sm:$0xff]
    %v745 = vld [vmem:[#allocation7 + $0x158] sm:$0xf]
    %v746 = vld [vmem:[#allocation7 + $0x15c] sm:$0xff]
    %v747 = vld [vmem:[#allocation7 + $0x164] sm:$0xf]
    %v748 = vld [vmem:[#allocation7 + $0x168] sm:$0xff]
    %v749 = vld [vmem:[#allocation7 + $0x170] sm:$0xf]
    %v750 = vld [vmem:[#allocation7 + $0x174] sm:$0xff]
    %v751 = vld [vmem:[#allocation7 + $0x17c] sm:$0xf]
    %v752 = vld [vmem:[#allocation7 + $0x180] sm:$0xff]
    %v753 = vld [vmem:[#allocation7 + $0x188] sm:$0xf]
    %v754 = vld [vmem:[#allocation7 + $0x18c] sm:$0xff]
    %v755 = vld [vmem:[#allocation7 + $0x194] sm:$0xf]
    %v756 = vld [vmem:[#allocation7 + $0x198] sm:$0xff]
    %v757 = vld [vmem:[#allocation7 + $0x1a0] sm:$0xf]
    %v758 = vld [vmem:[#allocation7 + $0x1a4] sm:$0xff]
    %v759 = vld [vmem:[#allocation7 + $0x1ac] sm:$0xf]
    %v760 = vld [vmem:[#allocation7 + $0x1b0] sm:$0xff]
    %v761 = vld [vmem:[#allocation7 + $0x1b8] sm:$0xf]
    %v762 = vld [vmem:[#allocation7 + $0x1bc] sm:$0xff]
    %v763 = vld [vmem:[#allocation7 + $0x1c4] sm:$0xf]
    %v764 = vld [vmem:[#allocation7 + $0x1c8] sm:$0xff]
    %v765 = vld [vmem:[#allocation7 + $0x1d0] sm:$0xf]
    %v766 = vld [vmem:[#allocation7 + $0x1d4] sm:$0xff]
    %v767 = vld [vmem:[#allocation7 + $0x1dc] sm:$0xf]
    %v768 = vld [vmem:[#allocation7 + $0x1e0] sm:$0xff]
    %v769 = vld [vmem:[#allocation7 + $0x1e8] sm:$0xf]
    %v770 = vld [vmem:[#allocation7 + $0x1ec] sm:$0xff]
    %v771 = vld [vmem:[#allocation7 + $0x1f4] sm:$0xf]
    %v772 = vld [vmem:[#allocation7 + $0x1f8] sm:$0xff]
    %v773 = vld [vmem:[#allocation7 + $0x200] sm:$0xf]
    %v774 = vld [vmem:[#allocation7 + $0x204] sm:$0xff]
    %v775 = vld [vmem:[#allocation7 + $0x20c] sm:$0xf]
    %v776 = vld [vmem:[#allocation7 + $0x210] sm:$0xff]
    %v777 = vld [vmem:[#allocation7 + $0x218] sm:$0xf]
    %v778 = vld [vmem:[#allocation7 + $0x21c] sm:$0xff]
    %v779 = vld [vmem:[#allocation7 + $0x224] sm:$0xf]
    %v780 = vld [vmem:[#allocation7 + $0x228] sm:$0xff]
    %v781 = vld [vmem:[#allocation7 + $0x230] sm:$0xf]
    %v782 = vld [vmem:[#allocation7 + $0x234] sm:$0xff]
    %v783 = vld [vmem:[#allocation7 + $0x23c] sm:$0xf]
    %v784 = vld [vmem:[#allocation7 + $0x240] sm:$0xff]
    %v785 = vld [vmem:[#allocation7 + $0x248] sm:$0xf]
    %v786 = vld [vmem:[#allocation7 + $0x24c] sm:$0xff]
    %v787 = vld [vmem:[#allocation7 + $0x254] sm:$0xf]
    %v788 = vld [vmem:[#allocation7 + $0x258] sm:$0xff]
    %v789 = vld [vmem:[#allocation7 + $0x260] sm:$0xf]
    %v790 = vld [vmem:[#allocation7 + $0x264] sm:$0xff]
    %v791 = vld [vmem:[#allocation7 + $0x26c] sm:$0xf]
    %v792 = vld [vmem:[#allocation7 + $0x270] sm:$0xff]
    %v793 = vld [vmem:[#allocation7 + $0x278] sm:$0xf]
    %v794 = vld [vmem:[#allocation7 + $0x27c] sm:$0xff]
    %v795 = vld [vmem:[#allocation7 + $0x284] sm:$0xf]
    %v796 = vld [vmem:[#allocation7 + $0x288] sm:$0xff]
    %v797 = vld [vmem:[#allocation7 + $0x290] sm:$0xf]
    %v798 = vld [vmem:[#allocation7 + $0x294] sm:$0xff]
    %v799 = vld [vmem:[#allocation7 + $0x29c] sm:$0xf]
    %v800 = vld [vmem:[#allocation7 + $0x2a0] sm:$0xff]
    %v801 = vld [vmem:[#allocation7 + $0x2a8] sm:$0xf]
    %v802 = vld [vmem:[#allocation7 + $0x2ac] sm:$0xff]
    %v803 = vld [vmem:[#allocation7 + $0x2b4] sm:$0xf]
    %v804 = vld [vmem:[#allocation7 + $0x2b8] sm:$0xff]
    %v805 = vld [vmem:[#allocation7 + $0x2c0] sm:$0xf]
    %v806 = vld [vmem:[#allocation7 + $0x2c4] sm:$0xff]
    %v807 = vld [vmem:[#allocation7 + $0x2cc] sm:$0xf]
    %v808 = vld [vmem:[#allocation7 + $0x2d0] sm:$0xff]
    %v809 = vld [vmem:[#allocation7 + $0x2d8] sm:$0xf]
    %v810 = vld [vmem:[#allocation7 + $0x2dc] sm:$0xff]
    %v811 = vld [vmem:[#allocation7 + $0x2e4] sm:$0xf]
    %v812 = vld [vmem:[#allocation7 + $0x2e8] sm:$0xff]
    %v813 = vld [vmem:[#allocation7 + $0x2f0] sm:$0xf]
    %v814 = vld [vmem:[#allocation7 + $0x2f4] sm:$0xff]
    %v815 = vld [vmem:[#allocation7 + $0x2fc] sm:$0xf]
    %v816 = vlaneseq
    %v817 = vshrl.u32 %v816, 7
    %v818 = vsub.s32 1, %v817
    %v819 = vrot.slane %v87, %v818
    %v820 = vlaneseq
    %v821 = vshrl.u32 %v820, 7
    %v822 = vsub.s32 1, %v821
    %v823 = vrot.slane %v88, %v822
    %v824 = vlaneseq
    %v825 = vshrl.u32 %v824, 7
    %v826 = vsub.s32 1, %v825
    %v827 = vrot.slane %v89, %v826
    %v956 = vunpack.c.l.b16 %v688
    %v957 = vunpack.c.h.b16 %v688
    %v958 = vunpack.c.l.b16 %v689
    %v959 = vunpack.c.l.b16 %v690
    %v960 = vunpack.c.h.b16 %v690
    %v961 = vunpack.c.l.b16 %v691
    %v962 = vunpack.c.l.b16 %v692
    %v963 = vunpack.c.h.b16 %v692
    %v964 = vunpack.c.l.b16 %v693
    %v965 = vunpack.c.l.b16 %v694
    %v966 = vunpack.c.h.b16 %v694
    %v967 = vunpack.c.l.b16 %v695
    %v968 = vunpack.c.l.b16 %v696
    %v969 = vunpack.c.h.b16 %v696
    %v970 = vunpack.c.l.b16 %v697
    %v971 = vunpack.c.l.b16 %v698
    %v972 = vunpack.c.h.b16 %v698
    %v973 = vunpack.c.l.b16 %v699
    %v974 = vunpack.c.l.b16 %v700
    %v975 = vunpack.c.h.b16 %v700
    %v976 = vunpack.c.l.b16 %v701
    %v977 = vunpack.c.l.b16 %v702
    %v978 = vunpack.c.h.b16 %v702
    %v979 = vunpack.c.l.b16 %v703
    %v980 = vunpack.c.l.b16 %v704
    %v981 = vunpack.c.h.b16 %v704
    %v982 = vunpack.c.l.b16 %v705
    %v983 = vunpack.c.l.b16 %v706
    %v984 = vunpack.c.h.b16 %v706
    %v985 = vunpack.c.l.b16 %v707
    %v986 = vunpack.c.l.b16 %v708
    %v987 = vunpack.c.h.b16 %v708
    %v988 = vunpack.c.l.b16 %v709
    %v989 = vunpack.c.l.b16 %v710
    %v990 = vunpack.c.h.b16 %v710
    %v991 = vunpack.c.l.b16 %v711
    %v992 = vunpack.c.l.b16 %v712
    %v993 = vunpack.c.h.b16 %v712
    %v994 = vunpack.c.l.b16 %v713
    %v995 = vunpack.c.l.b16 %v714
    %v996 = vunpack.c.h.b16 %v714
    %v997 = vunpack.c.l.b16 %v715
    %v998 = vunpack.c.l.b16 %v716
    %v999 = vunpack.c.h.b16 %v716
    %v1000 = vunpack.c.l.b16 %v717
    %v1001 = vunpack.c.l.b16 %v718
    %v1002 = vunpack.c.h.b16 %v718
    %v1003 = vunpack.c.l.b16 %v719
    %v1004 = vunpack.c.l.b16 %v720
    %v1005 = vunpack.c.h.b16 %v720
    %v1006 = vunpack.c.l.b16 %v721
    %v1007 = vunpack.c.l.b16 %v722
    %v1008 = vunpack.c.h.b16 %v722
    %v1009 = vunpack.c.l.b16 %v723
    %v1010 = vunpack.c.l.b16 %v724
    %v1011 = vunpack.c.h.b16 %v724
    %v1012 = vunpack.c.l.b16 %v725
    %v1013 = vunpack.c.l.b16 %v726
    %v1014 = vunpack.c.h.b16 %v726
    %v1015 = vunpack.c.l.b16 %v727
    %v1016 = vunpack.c.l.b16 %v728
    %v1017 = vunpack.c.h.b16 %v728
    %v1018 = vunpack.c.l.b16 %v729
    %v1019 = vunpack.c.l.b16 %v730
    %v1020 = vunpack.c.h.b16 %v730
    %v1021 = vunpack.c.l.b16 %v731
    %v1022 = vunpack.c.l.b16 %v732
    %v1023 = vunpack.c.h.b16 %v732
    %v1024 = vunpack.c.l.b16 %v733
    %v1025 = vunpack.c.l.b16 %v734
    %v1026 = vunpack.c.h.b16 %v734
    %v1027 = vunpack.c.l.b16 %v735
    %v1028 = vunpack.c.l.b16 %v736
    %v1029 = vunpack.c.h.b16 %v736
    %v1030 = vunpack.c.l.b16 %v737
    %v1031 = vunpack.c.l.b16 %v738
    %v1032 = vunpack.c.h.b16 %v738
    %v1033 = vunpack.c.l.b16 %v739
    %v1034 = vunpack.c.l.b16 %v740
    %v1035 = vunpack.c.h.b16 %v740
    %v1036 = vunpack.c.l.b16 %v741
    %v1037 = vunpack.c.l.b16 %v742
    %v1038 = vunpack.c.h.b16 %v742
    %v1039 = vunpack.c.l.b16 %v743
    %v1040 = vunpack.c.l.b16 %v744
    %v1041 = vunpack.c.h.b16 %v744
    %v1042 = vunpack.c.l.b16 %v745
    %v1043 = vunpack.c.l.b16 %v746
    %v1044 = vunpack.c.h.b16 %v746
    %v1045 = vunpack.c.l.b16 %v747
    %v1046 = vunpack.c.l.b16 %v748
    %v1047 = vunpack.c.h.b16 %v748
    %v1048 = vunpack.c.l.b16 %v749
    %v1049 = vunpack.c.l.b16 %v750
    %v1050 = vunpack.c.h.b16 %v750
    %v1051 = vunpack.c.l.b16 %v751
    %v1052 = vunpack.c.l.b16 %v752
    %v1053 = vunpack.c.h.b16 %v752
    %v1054 = vunpack.c.l.b16 %v753
    %v1055 = vunpack.c.l.b16 %v754
    %v1056 = vunpack.c.h.b16 %v754
    %v1057 = vunpack.c.l.b16 %v755
    %v1058 = vunpack.c.l.b16 %v756
    %v1059 = vunpack.c.h.b16 %v756
    %v1060 = vunpack.c.l.b16 %v757
    %v1061 = vunpack.c.l.b16 %v758
    %v1062 = vunpack.c.h.b16 %v758
    %v1063 = vunpack.c.l.b16 %v759
    %v1064 = vunpack.c.l.b16 %v760
    %v1065 = vunpack.c.h.b16 %v760
    %v1066 = vunpack.c.l.b16 %v761
    %v1067 = vunpack.c.l.b16 %v762
    %v1068 = vunpack.c.h.b16 %v762
    %v1069 = vunpack.c.l.b16 %v763
    %v1070 = vunpack.c.l.b16 %v764
    %v1071 = vunpack.c.h.b16 %v764
    %v1072 = vunpack.c.l.b16 %v765
    %v1073 = vunpack.c.l.b16 %v766
    %v1074 = vunpack.c.h.b16 %v766
    %v1075 = vunpack.c.l.b16 %v767
    %v1076 = vunpack.c.l.b16 %v768
    %v1077 = vunpack.c.h.b16 %v768
    %v1078 = vunpack.c.l.b16 %v769
    %v1079 = vunpack.c.l.b16 %v770
    %v1080 = vunpack.c.h.b16 %v770
    %v1081 = vunpack.c.l.b16 %v771
    %v1082 = vunpack.c.l.b16 %v772
    %v1083 = vunpack.c.h.b16 %v772
    %v1084 = vunpack.c.l.b16 %v773
    %v1085 = vunpack.c.l.b16 %v774
    %v1086 = vunpack.c.h.b16 %v774
    %v1087 = vunpack.c.l.b16 %v775
    %v1088 = vunpack.c.l.b16 %v776
    %v1089 = vunpack.c.h.b16 %v776
    %v1090 = vunpack.c.l.b16 %v777
    %v1091 = vunpack.c.l.b16 %v778
    %v1092 = vunpack.c.h.b16 %v778
    %v1093 = vunpack.c.l.b16 %v779
    %v1094 = vunpack.c.l.b16 %v780
    %v1095 = vunpack.c.h.b16 %v780
    %v1096 = vunpack.c.l.b16 %v781
    %v1097 = vunpack.c.l.b16 %v782
    %v1098 = vunpack.c.h.b16 %v782
    %v1099 = vunpack.c.l.b16 %v783
    %v1100 = vunpack.c.l.b16 %v784
    %v1101 = vunpack.c.h.b16 %v784
    %v1102 = vunpack.c.l.b16 %v785
    %v1103 = vunpack.c.l.b16 %v786
    %v1104 = vunpack.c.h.b16 %v786
    %v1105 = vunpack.c.l.b16 %v787
    %v1106 = vunpack.c.l.b16 %v788
    %v1107 = vunpack.c.h.b16 %v788
    %v1108 = vunpack.c.l.b16 %v789
    %v1109 = vunpack.c.l.b16 %v790
    %v1110 = vunpack.c.h.b16 %v790
    %v1111 = vunpack.c.l.b16 %v791
    %v1112 = vunpack.c.l.b16 %v792
    %v1113 = vunpack.c.h.b16 %v792
    %v1114 = vunpack.c.l.b16 %v793
    %v1115 = vunpack.c.l.b16 %v794
    %v1116 = vunpack.c.h.b16 %v794
    %v1117 = vunpack.c.l.b16 %v795
    %v1118 = vunpack.c.l.b16 %v796
    %v1119 = vunpack.c.h.b16 %v796
    %v1120 = vunpack.c.l.b16 %v797
    %v1121 = vunpack.c.l.b16 %v798
    %v1122 = vunpack.c.h.b16 %v798
    %v1123 = vunpack.c.l.b16 %v799
    %v1124 = vunpack.c.l.b16 %v800
    %v1125 = vunpack.c.h.b16 %v800
    %v1126 = vunpack.c.l.b16 %v801
    %v1127 = vunpack.c.l.b16 %v802
    %v1128 = vunpack.c.h.b16 %v802
    %v1129 = vunpack.c.l.b16 %v803
    %v1130 = vunpack.c.l.b16 %v804
    %v1131 = vunpack.c.h.b16 %v804
    %v1132 = vunpack.c.l.b16 %v805
    %v1133 = vunpack.c.l.b16 %v806
    %v1134 = vunpack.c.h.b16 %v806
    %v1135 = vunpack.c.l.b16 %v807
    %v1136 = vunpack.c.l.b16 %v808
    %v1137 = vunpack.c.h.b16 %v808
    %v1138 = vunpack.c.l.b16 %v809
    %v1139 = vunpack.c.l.b16 %v810
    %v1140 = vunpack.c.h.b16 %v810
    %v1141 = vunpack.c.l.b16 %v811
    %v1142 = vunpack.c.l.b16 %v812
    %v1143 = vunpack.c.h.b16 %v812
    %v1144 = vunpack.c.l.b16 %v813
    %v1145 = vunpack.c.l.b16 %v814
    %v1146 = vunpack.c.h.b16 %v814
    %v1147 = vunpack.c.l.b16 %v815
    %v1148 = vpack.c.b16 %v959, %v956
    %v1149 = vpack.c.b16 %v960, %v957
    %v1150 = vpack.c.b16 %v961, %v958
    %v1151 = vpack.c.b16 %v965, %v962
    %v1152 = vpack.c.b16 %v966, %v963
    %v1153 = vpack.c.b16 %v967, %v964
    %v1154 = vpack.c.b16 %v971, %v968
    %v1155 = vpack.c.b16 %v972, %v969
    %v1156 = vpack.c.b16 %v973, %v970
    %v1157 = vpack.c.b16 %v977, %v974
    %v1158 = vpack.c.b16 %v978, %v975
    %v1159 = vpack.c.b16 %v979, %v976
    %v1160 = vpack.c.b16 %v983, %v980
    %v1161 = vpack.c.b16 %v984, %v981
    %v1162 = vpack.c.b16 %v985, %v982
    %v1163 = vpack.c.b16 %v989, %v986
    %v1164 = vpack.c.b16 %v990, %v987
    %v1165 = vpack.c.b16 %v991, %v988
    %v1166 = vpack.c.b16 %v995, %v992
    %v1167 = vpack.c.b16 %v996, %v993
    %v1168 = vpack.c.b16 %v997, %v994
    %v1169 = vpack.c.b16 %v1001, %v998
    %v1170 = vpack.c.b16 %v1002, %v999
    %v1171 = vpack.c.b16 %v1003, %v1000
    %v1172 = vpack.c.b16 %v1007, %v1004
    %v1173 = vpack.c.b16 %v1008, %v1005
    %v1174 = vpack.c.b16 %v1009, %v1006
    %v1175 = vpack.c.b16 %v1013, %v1010
    %v1176 = vpack.c.b16 %v1014, %v1011
    %v1177 = vpack.c.b16 %v1015, %v1012
    %v1178 = vpack.c.b16 %v1019, %v1016
    %v1179 = vpack.c.b16 %v1020, %v1017
    %v1180 = vpack.c.b16 %v1021, %v1018
    %v1181 = vpack.c.b16 %v1025, %v1022
    %v1182 = vpack.c.b16 %v1026, %v1023
    %v1183 = vpack.c.b16 %v1027, %v1024
    %v1184 = vpack.c.b16 %v1031, %v1028
    %v1185 = vpack.c.b16 %v1032, %v1029
    %v1186 = vpack.c.b16 %v1033, %v1030
    %v1187 = vpack.c.b16 %v1037, %v1034
    %v1188 = vpack.c.b16 %v1038, %v1035
    %v1189 = vpack.c.b16 %v1039, %v1036
    %v1190 = vpack.c.b16 %v1043, %v1040
    %v1191 = vpack.c.b16 %v1044, %v1041
    %v1192 = vpack.c.b16 %v1045, %v1042
    %v1193 = vpack.c.b16 %v1049, %v1046
    %v1194 = vpack.c.b16 %v1050, %v1047
    %v1195 = vpack.c.b16 %v1051, %v1048
    %v1196 = vpack.c.b16 %v1055, %v1052
    %v1197 = vpack.c.b16 %v1056, %v1053
    %v1198 = vpack.c.b16 %v1057, %v1054
    %v1199 = vpack.c.b16 %v1061, %v1058
    %v1200 = vpack.c.b16 %v1062, %v1059
    %v1201 = vpack.c.b16 %v1063, %v1060
    %v1202 = vpack.c.b16 %v1067, %v1064
    %v1203 = vpack.c.b16 %v1068, %v1065
    %v1204 = vpack.c.b16 %v1069, %v1066
    %v1205 = vpack.c.b16 %v1073, %v1070
    %v1206 = vpack.c.b16 %v1074, %v1071
    %v1207 = vpack.c.b16 %v1075, %v1072
    %v1208 = vpack.c.b16 %v1079, %v1076
    %v1209 = vpack.c.b16 %v1080, %v1077
    %v1210 = vpack.c.b16 %v1081, %v1078
    %v1211 = vpack.c.b16 %v1085, %v1082
    %v1212 = vpack.c.b16 %v1086, %v1083
    %v1213 = vpack.c.b16 %v1087, %v1084
    %v1214 = vpack.c.b16 %v1091, %v1088
    %v1215 = vpack.c.b16 %v1092, %v1089
    %v1216 = vpack.c.b16 %v1093, %v1090
    %v1217 = vpack.c.b16 %v1097, %v1094
    %v1218 = vpack.c.b16 %v1098, %v1095
    %v1219 = vpack.c.b16 %v1099, %v1096
    %v1220 = vpack.c.b16 %v1103, %v1100
    %v1221 = vpack.c.b16 %v1104, %v1101
    %v1222 = vpack.c.b16 %v1105, %v1102
    %v1223 = vpack.c.b16 %v1109, %v1106
    %v1224 = vpack.c.b16 %v1110, %v1107
    %v1225 = vpack.c.b16 %v1111, %v1108
    %v1226 = vpack.c.b16 %v1115, %v1112
    %v1227 = vpack.c.b16 %v1116, %v1113
    %v1228 = vpack.c.b16 %v1117, %v1114
    %v1229 = vpack.c.b16 %v1121, %v1118
    %v1230 = vpack.c.b16 %v1122, %v1119
    %v1231 = vpack.c.b16 %v1123, %v1120
    %v1232 = vpack.c.b16 %v1127, %v1124
    %v1233 = vpack.c.b16 %v1128, %v1125
    %v1234 = vpack.c.b16 %v1129, %v1126
    %v1235 = vpack.c.b16 %v1133, %v1130
    %v1236 = vpack.c.b16 %v1134, %v1131
    %v1237 = vpack.c.b16 %v1135, %v1132
    %v1238 = vpack.c.b16 %v1139, %v1136
    %v1239 = vpack.c.b16 %v1140, %v1137
    %v1240 = vpack.c.b16 %v1141, %v1138
    %v1241 = vpack.c.b16 %v1145, %v1142
    %v1242 = vpack.c.b16 %v1146, %v1143
    %v1243 = vpack.c.b16 %v1147, %v1144
    %1340 = vmatprep.subr.bf16.mxu0 %v1149
    %1341 = vmatpush1.bf16.msra.mxu0 %v1148
    %1342 = vmatprep.subr.bf16.mxu0 %v1152
    %1343 = vmatpush1.bf16.msra.mxu0 %v1151
    %1344 = vmatprep.subr.bf16.mxu0 %v1155
    %1345 = vmatpush1.bf16.msra.mxu0 %v1154
    %1346 = vmatprep.subr.bf16.mxu0 %v1158
    %1347 = vmatpush1.bf16.msra.mxu0 %v1157
    %1348 = vmatprep.subr.bf16.mxu0 %v1161
    %1349 = vmatpush1.bf16.msra.mxu0 %v1160
    %1350 = vmatprep.subr.bf16.mxu0 %v1164
    %1351 = vmatpush1.bf16.msra.mxu0 %v1163
    %1352 = vmatprep.subr.bf16.mxu0 %v1167
    %1353 = vmatpush1.bf16.msra.mxu0 %v1166
    %1354 = vmatprep.subr.bf16.mxu0 %v1170
    %1355 = vmatpush1.bf16.msra.mxu0 %v1169
    %1356 = vmatprep.subr.bf16.mxu0 %v1173
    %1357 = vmatpush1.bf16.msra.mxu0 %v1172
    %1358 = vmatprep.subr.bf16.mxu0 %v1176
    %1359 = vmatpush1.bf16.msra.mxu0 %v1175
    %1360 = vmatprep.subr.bf16.mxu0 %v1179
    %1361 = vmatpush1.bf16.msra.mxu0 %v1178
    %1362 = vmatprep.subr.bf16.mxu0 %v1182
    %1363 = vmatpush1.bf16.msra.mxu0 %v1181
    %1364 = vmatprep.subr.bf16.mxu0 %v1185
    %1365 = vmatpush1.bf16.msra.mxu0 %v1184
    %1366 = vmatprep.subr.bf16.mxu0 %v1188
    %1367 = vmatpush1.bf16.msra.mxu0 %v1187
    %1368 = vmatprep.subr.bf16.mxu0 %v1191
    %1369 = vmatpush1.bf16.msra.mxu0 %v1190
    %1370 = vmatprep.subr.bf16.mxu0 %v1194
    %1371 = vmatpush1.bf16.msra.mxu0 %v1193
    %1372 = vmatprep.mubr.bf16.mxu0 %v685
    %1373 = vmatmul.mubr.bf16.gmra.mrb[0].mxu0 %v684
    %v1374 = vpop.f32.mrb[0].mxu0
    %v1375 = vadd.f32 %v819, %v1374
    %v1376 = vpop.f32.mrb[0].mxu0
    %v1377 = vadd.f32 %v823, %v1376
    %v1378 = vpop.f32.mrb[0].mxu0
    %v1379 = vpop.f32.mrb[0].mxu0
    %1380 = vdwg.mxu0
    %1381 = vmatprep.subr.bf16.mxu0 %v1197
    %1382 = vmatpush1.bf16.msra.mxu0 %v1196
    %1383 = vmatprep.subr.bf16.mxu0 %v1200
    %1384 = vmatpush1.bf16.msra.mxu0 %v1199
    %1385 = vmatprep.subr.bf16.mxu0 %v1203
    %1386 = vmatpush1.bf16.msra.mxu0 %v1202
    %1387 = vmatprep.subr.bf16.mxu0 %v1206
    %1388 = vmatpush1.bf16.msra.mxu0 %v1205
    %1389 = vmatprep.subr.bf16.mxu0 %v1209
    %1390 = vmatpush1.bf16.msra.mxu0 %v1208
    %1391 = vmatprep.subr.bf16.mxu0 %v1212
    %1392 = vmatpush1.bf16.msra.mxu0 %v1211
    %1393 = vmatprep.subr.bf16.mxu0 %v1215
    %1394 = vmatpush1.bf16.msra.mxu0 %v1214
    %1395 = vmatprep.subr.bf16.mxu0 %v1218
    %1396 = vmatpush1.bf16.msra.mxu0 %v1217
    %1397 = vmatprep.subr.bf16.mxu0 %v1221
    %1398 = vmatpush1.bf16.msra.mxu0 %v1220
    %1399 = vmatprep.subr.bf16.mxu0 %v1224
    %1400 = vmatpush1.bf16.msra.mxu0 %v1223
    %1401 = vmatprep.subr.bf16.mxu0 %v1227
    %1402 = vmatpush1.bf16.msra.mxu0 %v1226
    %1403 = vmatprep.subr.bf16.mxu0 %v1230
    %1404 = vmatpush1.bf16.msra.mxu0 %v1229
    %1405 = vmatprep.subr.bf16.mxu0 %v1233
    %1406 = vmatpush1.bf16.msra.mxu0 %v1232
    %1407 = vmatprep.subr.bf16.mxu0 %v1236
    %1408 = vmatpush1.bf16.msra.mxu0 %v1235
    %1409 = vmatprep.subr.bf16.mxu0 %v1239
    %1410 = vmatpush1.bf16.msra.mxu0 %v1238
    %1411 = vmatprep.subr.bf16.mxu0 %v1242
    %1412 = vmatpush1.bf16.msra.mxu0 %v1241
    %1413 = vmatprep.mubr.bf16.mxu0 %v687
    %1414 = vmatmul.mubr.bf16.gmra.mrb[0].mxu0 %v686
    %v1415 = vpop.f32.mrb[0].mxu0
    %v1416 = vadd.f32 %v1375, %v1415
    %v1417 = vpop.f32.mrb[0].mxu0
    %v1418 = vadd.f32 %v1377, %v1417
    %v1419 = vpop.f32.mrb[0].mxu0
    %v1420 = vpop.f32.mrb[0].mxu0
    %1421 = vdwg.mxu0
    %1422 = vmatprep.subr.bf16.mxu0 0
    %1423 = vmatpush1.bf16.msra.mxu0 %v1150
    %1424 = vmatprep.subr.bf16.mxu0 0
    %1425 = vmatpush1.bf16.msra.mxu0 %v1153
    %1426 = vmatprep.subr.bf16.mxu0 0
    %1427 = vmatpush1.bf16.msra.mxu0 %v1156
    %1428 = vmatprep.subr.bf16.mxu0 0
    %1429 = vmatpush1.bf16.msra.mxu0 %v1159
    %1430 = vmatprep.subr.bf16.mxu0 0
    %1431 = vmatpush1.bf16.msra.mxu0 %v1162
    %1432 = vmatprep.subr.bf16.mxu0 0
    %1433 = vmatpush1.bf16.msra.mxu0 %v1165
    %1434 = vmatprep.subr.bf16.mxu0 0
    %1435 = vmatpush1.bf16.msra.mxu0 %v1168
    %1436 = vmatprep.subr.bf16.mxu0 0
    %1437 = vmatpush1.bf16.msra.mxu0 %v1171
    %1438 = vmatprep.subr.bf16.mxu0 0
    %1439 = vmatpush1.bf16.msra.mxu0 %v1174
    %1440 = vmatprep.subr.bf16.mxu0 0
    %1441 = vmatpush1.bf16.msra.mxu0 %v1177
    %1442 = vmatprep.subr.bf16.mxu0 0
    %1443 = vmatpush1.bf16.msra.mxu0 %v1180
    %1444 = vmatprep.subr.bf16.mxu0 0
    %1445 = vmatpush1.bf16.msra.mxu0 %v1183
    %1446 = vmatprep.subr.bf16.mxu0 0
    %1447 = vmatpush1.bf16.msra.mxu0 %v1186
    %1448 = vmatprep.subr.bf16.mxu0 0
    %1449 = vmatpush1.bf16.msra.mxu0 %v1189
    %1450 = vmatprep.subr.bf16.mxu0 0
    %1451 = vmatpush1.bf16.msra.mxu0 %v1192
    %1452 = vmatprep.subr.bf16.mxu0 0
    %1453 = vmatpush1.bf16.msra.mxu0 %v1195
    %1454 = vmatprep.mubr.bf16.mxu0 %v685
    %1455 = vmatmul.mubr.bf16.gmra.mrb[0].mxu0 %v684
    %v1456 = vpop.f32.mrb[0].mxu0
    %v1457 = vadd.f32 %v827, %v1456
    %v1458 = vpop.f32.mrb[0].mxu0
    %v1459 = vpop.f32.mrb[0].mxu0
    %v1460 = vpop.f32.mrb[0].mxu0
    %1461 = vdwg.mxu0
    %1462 = vmatprep.subr.bf16.mxu0 0
    %1463 = vmatpush1.bf16.msra.mxu0 %v1198
    %1464 = vmatprep.subr.bf16.mxu0 0
    %1465 = vmatpush1.bf16.msra.mxu0 %v1201
    %1466 = vmatprep.subr.bf16.mxu0 0
    %1467 = vmatpush1.bf16.msra.mxu0 %v1204
    %1468 = vmatprep.subr.bf16.mxu0 0
    %1469 = vmatpush1.bf16.msra.mxu0 %v1207
    %1470 = vmatprep.subr.bf16.mxu0 0
    %1471 = vmatpush1.bf16.msra.mxu0 %v1210
    %1472 = vmatprep.subr.bf16.mxu0 0
    %1473 = vmatpush1.bf16.msra.mxu0 %v1213
    %1474 = vmatprep.subr.bf16.mxu0 0
    %1475 = vmatpush1.bf16.msra.mxu0 %v1216
    %1476 = vmatprep.subr.bf16.mxu0 0
    %1477 = vmatpush1.bf16.msra.mxu0 %v1219
    %1478 = vmatprep.subr.bf16.mxu0 0
    %1479 = vmatpush1.bf16.msra.mxu0 %v1222
    %1480 = vmatprep.subr.bf16.mxu0 0
    %1481 = vmatpush1.bf16.msra.mxu0 %v1225
    %1482 = vmatprep.subr.bf16.mxu0 0
    %1483 = vmatpush1.bf16.msra.mxu0 %v1228
    %1484 = vmatprep.subr.bf16.mxu0 0
    %1485 = vmatpush1.bf16.msra.mxu0 %v1231
    %1486 = vmatprep.subr.bf16.mxu0 0
    %1487 = vmatpush1.bf16.msra.mxu0 %v1234
    %1488 = vmatprep.subr.bf16.mxu0 0
    %1489 = vmatpush1.bf16.msra.mxu0 %v1237
    %1490 = vmatprep.subr.bf16.mxu0 0
    %1491 = vmatpush1.bf16.msra.mxu0 %v1240
    %1492 = vmatprep.subr.bf16.mxu0 0
    %1493 = vmatpush1.bf16.msra.mxu0 %v1243
    %1494 = vmatprep.mubr.bf16.mxu0 %v687
    %1495 = vmatmul.mubr.bf16.gmra.mrb[0].mxu0 %v686
    %v1496 = vpop.f32.mrb[0].mxu0
    %v1497 = vadd.f32 %v1457, %v1496
    %v1498 = vpop.f32.mrb[0].mxu0
    %v1499 = vpop.f32.mrb[0].mxu0
    %v1500 = vpop.f32.mrb[0].mxu0
    %1501 = vdwg.mxu0
    %v1502 = vmax.f32 %v1416, 0.0
    %v1503 = vmax.f32 %v1418, 0.0
    %v1504 = vmax.f32 %v1497, 0.0
    %v1505 = vpack.c.bf16 %v680, %v680
    %v1506 = vpack.c.bf16 %v681, %v681
    %v1507 = vpack.c.bf16 %v682, %v682
    %v1508 = vpack.c.bf16 %v683, %v683
    %s1509 = scalar_lea.vmem [#allocation7], 768
    %v1510 = vld [vmem:[%s1509] sm:$0xff]
    %v1511 = vld [vmem:[%s1509 + $0x8] sm:$0xf]
    %v1512 = vld [vmem:[%s1509 + $0xc] sm:$0xff]
    %v1513 = vld [vmem:[%s1509 + $0x14] sm:$0xf]
    %v1514 = vld [vmem:[%s1509 + $0x18] sm:$0xff]
    %v1515 = vld [vmem:[%s1509 + $0x20] sm:$0xf]
    %v1516 = vld [vmem:[%s1509 + $0x24] sm:$0xff]
    %v1517 = vld [vmem:[%s1509 + $0x2c] sm:$0xf]
    %v1518 = vld [vmem:[%s1509 + $0x30] sm:$0xff]
    %v1519 = vld [vmem:[%s1509 + $0x38] sm:$0xf]
    %v1520 = vld [vmem:[%s1509 + $0x3c] sm:$0xff]
    %v1521 = vld [vmem:[%s1509 + $0x44] sm:$0xf]
    %v1522 = vld [vmem:[%s1509 + $0x48] sm:$0xff]
    %v1523 = vld [vmem:[%s1509 + $0x50] sm:$0xf]
    %v1524 = vld [vmem:[%s1509 + $0x54] sm:$0xff]
    %v1525 = vld [vmem:[%s1509 + $0x5c] sm:$0xf]
    %v1526 = vld [vmem:[%s1509 + $0x60] sm:$0xff]
    %v1527 = vld [vmem:[%s1509 + $0x68] sm:$0xf]
    %v1528 = vld [vmem:[%s1509 + $0x6c] sm:$0xff]
    %v1529 = vld [vmem:[%s1509 + $0x74] sm:$0xf]
    %v1530 = vld [vmem:[%s1509 + $0x78] sm:$0xff]
    %v1531 = vld [vmem:[%s1509 + $0x80] sm:$0xf]
    %v1532 = vld [vmem:[%s1509 + $0x84] sm:$0xff]
    %v1533 = vld [vmem:[%s1509 + $0x8c] sm:$0xf]
    %v1534 = vld [vmem:[%s1509 + $0x90] sm:$0xff]
    %v1535 = vld [vmem:[%s1509 + $0x98] sm:$0xf]
    %v1536 = vld [vmem:[%s1509 + $0x9c] sm:$0xff]
    %v1537 = vld [vmem:[%s1509 + $0xa4] sm:$0xf]
    %v1538 = vld [vmem:[%s1509 + $0xa8] sm:$0xff]
    %v1539 = vld [vmem:[%s1509 + $0xb0] sm:$0xf]
    %v1540 = vld [vmem:[%s1509 + $0xb4] sm:$0xff]
    %v1541 = vld [vmem:[%s1509 + $0xbc] sm:$0xf]
    %v1542 = vld [vmem:[%s1509 + $0xc0] sm:$0xff]
    %v1543 = vld [vmem:[%s1509 + $0xc8] sm:$0xf]
    %v1544 = vld [vmem:[%s1509 + $0xcc] sm:$0xff]
    %v1545 = vld [vmem:[%s1509 + $0xd4] sm:$0xf]
    %v1546 = vld [vmem:[%s1509 + $0xd8] sm:$0xff]
    %v1547 = vld [vmem:[%s1509 + $0xe0] sm:$0xf]
    %v1548 = vld [vmem:[%s1509 + $0xe4] sm:$0xff]
    %v1549 = vld [vmem:[%s1509 + $0xec] sm:$0xf]
    %v1550 = vld [vmem:[%s1509 + $0xf0] sm:$0xff]
    %v1551 = vld [vmem:[%s1509 + $0xf8] sm:$0xf]
    %v1552 = vld [vmem:[%s1509 + $0xfc] sm:$0xff]
    %v1553 = vld [vmem:[%s1509 + $0x104] sm:$0xf]
    %v1554 = vld [vmem:[%s1509 + $0x108] sm:$0xff]
    %v1555 = vld [vmem:[%s1509 + $0x110] sm:$0xf]
    %v1556 = vld [vmem:[%s1509 + $0x114] sm:$0xff]
    %v1557 = vld [vmem:[%s1509 + $0x11c] sm:$0xf]
    %v1558 = vld [vmem:[%s1509 + $0x120] sm:$0xff]
    %v1559 = vld [vmem:[%s1509 + $0x128] sm:$0xf]
    %v1560 = vld [vmem:[%s1509 + $0x12c] sm:$0xff]
    %v1561 = vld [vmem:[%s1509 + $0x134] sm:$0xf]
    %v1562 = vld [vmem:[%s1509 + $0x138] sm:$0xff]
    %v1563 = vld [vmem:[%s1509 + $0x140] sm:$0xf]
    %v1564 = vld [vmem:[%s1509 + $0x144] sm:$0xff]
    %v1565 = vld [vmem:[%s1509 + $0x14c] sm:$0xf]
    %v1566 = vld [vmem:[%s1509 + $0x150] sm:$0xff]
    %v1567 = vld [vmem:[%s1509 + $0x158] sm:$0xf]
    %v1568 = vld [vmem:[%s1509 + $0x15c] sm:$0xff]
    %v1569 = vld [vmem:[%s1509 + $0x164] sm:$0xf]
    %v1570 = vld [vmem:[%s1509 + $0x168] sm:$0xff]
    %v1571 = vld [vmem:[%s1509 + $0x170] sm:$0xf]
    %v1572 = vld [vmem:[%s1509 + $0x174] sm:$0xff]
    %v1573 = vld [vmem:[%s1509 + $0x17c] sm:$0xf]
    %v1574 = vld [vmem:[%s1509 + $0x180] sm:$0xff]
    %v1575 = vld [vmem:[%s1509 + $0x188] sm:$0xf]
    %v1576 = vld [vmem:[%s1509 + $0x18c] sm:$0xff]
    %v1577 = vld [vmem:[%s1509 + $0x194] sm:$0xf]
    %v1578 = vld [vmem:[%s1509 + $0x198] sm:$0xff]
    %v1579 = vld [vmem:[%s1509 + $0x1a0] sm:$0xf]
    %v1580 = vld [vmem:[%s1509 + $0x1a4] sm:$0xff]
    %v1581 = vld [vmem:[%s1509 + $0x1ac] sm:$0xf]
    %v1582 = vld [vmem:[%s1509 + $0x1b0] sm:$0xff]
    %v1583 = vld [vmem:[%s1509 + $0x1b8] sm:$0xf]
    %v1584 = vld [vmem:[%s1509 + $0x1bc] sm:$0xff]
    %v1585 = vld [vmem:[%s1509 + $0x1c4] sm:$0xf]
    %v1586 = vld [vmem:[%s1509 + $0x1c8] sm:$0xff]
    %v1587 = vld [vmem:[%s1509 + $0x1d0] sm:$0xf]
    %v1588 = vld [vmem:[%s1509 + $0x1d4] sm:$0xff]
    %v1589 = vld [vmem:[%s1509 + $0x1dc] sm:$0xf]
    %v1590 = vld [vmem:[%s1509 + $0x1e0] sm:$0xff]
    %v1591 = vld [vmem:[%s1509 + $0x1e8] sm:$0xf]
    %v1592 = vld [vmem:[%s1509 + $0x1ec] sm:$0xff]
    %v1593 = vld [vmem:[%s1509 + $0x1f4] sm:$0xf]
    %v1594 = vld [vmem:[%s1509 + $0x1f8] sm:$0xff]
    %v1595 = vld [vmem:[%s1509 + $0x200] sm:$0xf]
    %v1596 = vld [vmem:[%s1509 + $0x204] sm:$0xff]
    %v1597 = vld [vmem:[%s1509 + $0x20c] sm:$0xf]
    %v1598 = vld [vmem:[%s1509 + $0x210] sm:$0xff]
    %v1599 = vld [vmem:[%s1509 + $0x218] sm:$0xf]
    %v1600 = vld [vmem:[%s1509 + $0x21c] sm:$0xff]
    %v1601 = vld [vmem:[%s1509 + $0x224] sm:$0xf]
    %v1602 = vld [vmem:[%s1509 + $0x228] sm:$0xff]
    %v1603 = vld [vmem:[%s1509 + $0x230] sm:$0xf]
    %v1604 = vld [vmem:[%s1509 + $0x234] sm:$0xff]
    %v1605 = vld [vmem:[%s1509 + $0x23c] sm:$0xf]
    %v1606 = vld [vmem:[%s1509 + $0x240] sm:$0xff]
    %v1607 = vld [vmem:[%s1509 + $0x248] sm:$0xf]
    %v1608 = vld [vmem:[%s1509 + $0x24c] sm:$0xff]
    %v1609 = vld [vmem:[%s1509 + $0x254] sm:$0xf]
    %v1610 = vld [vmem:[%s1509 + $0x258] sm:$0xff]
    %v1611 = vld [vmem:[%s1509 + $0x260] sm:$0xf]
    %v1612 = vld [vmem:[%s1509 + $0x264] sm:$0xff]
    %v1613 = vld [vmem:[%s1509 + $0x26c] sm:$0xf]
    %v1614 = vld [vmem:[%s1509 + $0x270] sm:$0xff]
    %v1615 = vld [vmem:[%s1509 + $0x278] sm:$0xf]
    %v1616 = vld [vmem:[%s1509 + $0x27c] sm:$0xff]
    %v1617 = vld [vmem:[%s1509 + $0x284] sm:$0xf]
    %v1618 = vld [vmem:[%s1509 + $0x288] sm:$0xff]
    %v1619 = vld [vmem:[%s1509 + $0x290] sm:$0xf]
    %v1620 = vld [vmem:[%s1509 + $0x294] sm:$0xff]
    %v1621 = vld [vmem:[%s1509 + $0x29c] sm:$0xf]
    %v1622 = vld [vmem:[%s1509 + $0x2a0] sm:$0xff]
    %v1623 = vld [vmem:[%s1509 + $0x2a8] sm:$0xf]
    %v1624 = vld [vmem:[%s1509 + $0x2ac] sm:$0xff]
    %v1625 = vld [vmem:[%s1509 + $0x2b4] sm:$0xf]
    %v1626 = vld [vmem:[%s1509 + $0x2b8] sm:$0xff]
    %v1627 = vld [vmem:[%s1509 + $0x2c0] sm:$0xf]
    %v1628 = vld [vmem:[%s1509 + $0x2c4] sm:$0xff]
    %v1629 = vld [vmem:[%s1509 + $0x2cc] sm:$0xf]
    %v1630 = vld [vmem:[%s1509 + $0x2d0] sm:$0xff]
    %v1631 = vld [vmem:[%s1509 + $0x2d8] sm:$0xf]
    %v1632 = vld [vmem:[%s1509 + $0x2dc] sm:$0xff]
    %v1633 = vld [vmem:[%s1509 + $0x2e4] sm:$0xf]
    %v1634 = vld [vmem:[%s1509 + $0x2e8] sm:$0xff]
    %v1635 = vld [vmem:[%s1509 + $0x2f0] sm:$0xf]
    %v1636 = vld [vmem:[%s1509 + $0x2f4] sm:$0xff]
    %v1637 = vld [vmem:[%s1509 + $0x2fc] sm:$0xf]
    %v1638 = vlaneseq
    %v1639 = vshrl.u32 %v1638, 7
    %v1640 = vsub.s32 1, %v1639
    %v1641 = vrot.slane %v90, %v1640
    %v1642 = vlaneseq
    %v1643 = vshrl.u32 %v1642, 7
    %v1644 = vsub.s32 1, %v1643
    %v1645 = vrot.slane %v91, %v1644
    %v1646 = vlaneseq
    %v1647 = vshrl.u32 %v1646, 7
    %v1648 = vsub.s32 1, %v1647
    %v1649 = vrot.slane %v92, %v1648
    %v1778 = vunpack.c.l.b16 %v1510
    %v1779 = vunpack.c.h.b16 %v1510
    %v1780 = vunpack.c.l.b16 %v1511
    %v1781 = vunpack.c.l.b16 %v1512
    %v1782 = vunpack.c.h.b16 %v1512
    %v1783 = vunpack.c.l.b16 %v1513
    %v1784 = vunpack.c.l.b16 %v1514
    %v1785 = vunpack.c.h.b16 %v1514
    %v1786 = vunpack.c.l.b16 %v1515
    %v1787 = vunpack.c.l.b16 %v1516
    %v1788 = vunpack.c.h.b16 %v1516
    %v1789 = vunpack.c.l.b16 %v1517
    %v1790 = vunpack.c.l.b16 %v1518
    %v1791 = vunpack.c.h.b16 %v1518
    %v1792 = vunpack.c.l.b16 %v1519
    %v1793 = vunpack.c.l.b16 %v1520
    %v1794 = vunpack.c.h.b16 %v1520
    %v1795 = vunpack.c.l.b16 %v1521
    %v1796 = vunpack.c.l.b16 %v1522
    %v1797 = vunpack.c.h.b16 %v1522
    %v1798 = vunpack.c.l.b16 %v1523
    %v1799 = vunpack.c.l.b16 %v1524
    %v1800 = vunpack.c.h.b16 %v1524
    %v1801 = vunpack.c.l.b16 %v1525
    %v1802 = vunpack.c.l.b16 %v1526
    %v1803 = vunpack.c.h.b16 %v1526
    %v1804 = vunpack.c.l.b16 %v1527
    %v1805 = vunpack.c.l.b16 %v1528
    %v1806 = vunpack.c.h.b16 %v1528
    %v1807 = vunpack.c.l.b16 %v1529
    %v1808 = vunpack.c.l.b16 %v1530
    %v1809 = vunpack.c.h.b16 %v1530
    %v1810 = vunpack.c.l.b16 %v1531
    %v1811 = vunpack.c.l.b16 %v1532
    %v1812 = vunpack.c.h.b16 %v1532
    %v1813 = vunpack.c.l.b16 %v1533
    %v1814 = vunpack.c.l.b16 %v1534
    %v1815 = vunpack.c.h.b16 %v1534
    %v1816 = vunpack.c.l.b16 %v1535
    %v1817 = vunpack.c.l.b16 %v1536
    %v1818 = vunpack.c.h.b16 %v1536
    %v1819 = vunpack.c.l.b16 %v1537
    %v1820 = vunpack.c.l.b16 %v1538
    %v1821 = vunpack.c.h.b16 %v1538
    %v1822 = vunpack.c.l.b16 %v1539
    %v1823 = vunpack.c.l.b16 %v1540
    %v1824 = vunpack.c.h.b16 %v1540
    %v1825 = vunpack.c.l.b16 %v1541
    %v1826 = vunpack.c.l.b16 %v1542
    %v1827 = vunpack.c.h.b16 %v1542
    %v1828 = vunpack.c.l.b16 %v1543
    %v1829 = vunpack.c.l.b16 %v1544
    %v1830 = vunpack.c.h.b16 %v1544
    %v1831 = vunpack.c.l.b16 %v1545
    %v1832 = vunpack.c.l.b16 %v1546
    %v1833 = vunpack.c.h.b16 %v1546
    %v1834 = vunpack.c.l.b16 %v1547
    %v1835 = vunpack.c.l.b16 %v1548
    %v1836 = vunpack.c.h.b16 %v1548
    %v1837 = vunpack.c.l.b16 %v1549
    %v1838 = vunpack.c.l.b16 %v1550
    %v1839 = vunpack.c.h.b16 %v1550
    %v1840 = vunpack.c.l.b16 %v1551
    %v1841 = vunpack.c.l.b16 %v1552
    %v1842 = vunpack.c.h.b16 %v1552
    %v1843 = vunpack.c.l.b16 %v1553
    %v1844 = vunpack.c.l.b16 %v1554
    %v1845 = vunpack.c.h.b16 %v1554
    %v1846 = vunpack.c.l.b16 %v1555
    %v1847 = vunpack.c.l.b16 %v1556
    %v1848 = vunpack.c.h.b16 %v1556
    %v1849 = vunpack.c.l.b16 %v1557
    %v1850 = vunpack.c.l.b16 %v1558
    %v1851 = vunpack.c.h.b16 %v1558
    %v1852 = vunpack.c.l.b16 %v1559
    %v1853 = vunpack.c.l.b16 %v1560
    %v1854 = vunpack.c.h.b16 %v1560
    %v1855 = vunpack.c.l.b16 %v1561
    %v1856 = vunpack.c.l.b16 %v1562
    %v1857 = vunpack.c.h.b16 %v1562
    %v1858 = vunpack.c.l.b16 %v1563
    %v1859 = vunpack.c.l.b16 %v1564
    %v1860 = vunpack.c.h.b16 %v1564
    %v1861 = vunpack.c.l.b16 %v1565
    %v1862 = vunpack.c.l.b16 %v1566
    %v1863 = vunpack.c.h.b16 %v1566
    %v1864 = vunpack.c.l.b16 %v1567
    %v1865 = vunpack.c.l.b16 %v1568
    %v1866 = vunpack.c.h.b16 %v1568
    %v1867 = vunpack.c.l.b16 %v1569
    %v1868 = vunpack.c.l.b16 %v1570
    %v1869 = vunpack.c.h.b16 %v1570
    %v1870 = vunpack.c.l.b16 %v1571
    %v1871 = vunpack.c.l.b16 %v1572
    %v1872 = vunpack.c.h.b16 %v1572
    %v1873 = vunpack.c.l.b16 %v1573
    %v1874 = vunpack.c.l.b16 %v1574
    %v1875 = vunpack.c.h.b16 %v1574
    %v1876 = vunpack.c.l.b16 %v1575
    %v1877 = vunpack.c.l.b16 %v1576
    %v1878 = vunpack.c.h.b16 %v1576
    %v1879 = vunpack.c.l.b16 %v1577
    %v1880 = vunpack.c.l.b16 %v1578
    %v1881 = vunpack.c.h.b16 %v1578
    %v1882 = vunpack.c.l.b16 %v1579
    %v1883 = vunpack.c.l.b16 %v1580
    %v1884 = vunpack.c.h.b16 %v1580
    %v1885 = vunpack.c.l.b16 %v1581
    %v1886 = vunpack.c.l.b16 %v1582
    %v1887 = vunpack.c.h.b16 %v1582
    %v1888 = vunpack.c.l.b16 %v1583
    %v1889 = vunpack.c.l.b16 %v1584
    %v1890 = vunpack.c.h.b16 %v1584
    %v1891 = vunpack.c.l.b16 %v1585
    %v1892 = vunpack.c.l.b16 %v1586
    %v1893 = vunpack.c.h.b16 %v1586
    %v1894 = vunpack.c.l.b16 %v1587
    %v1895 = vunpack.c.l.b16 %v1588
    %v1896 = vunpack.c.h.b16 %v1588
    %v1897 = vunpack.c.l.b16 %v1589
    %v1898 = vunpack.c.l.b16 %v1590
    %v1899 = vunpack.c.h.b16 %v1590
    %v1900 = vunpack.c.l.b16 %v1591
    %v1901 = vunpack.c.l.b16 %v1592
    %v1902 = vunpack.c.h.b16 %v1592
    %v1903 = vunpack.c.l.b16 %v1593
    %v1904 = vunpack.c.l.b16 %v1594
    %v1905 = vunpack.c.h.b16 %v1594
    %v1906 = vunpack.c.l.b16 %v1595
    %v1907 = vunpack.c.l.b16 %v1596
    %v1908 = vunpack.c.h.b16 %v1596
    %v1909 = vunpack.c.l.b16 %v1597
    %v1910 = vunpack.c.l.b16 %v1598
    %v1911 = vunpack.c.h.b16 %v1598
    %v1912 = vunpack.c.l.b16 %v1599
    %v1913 = vunpack.c.l.b16 %v1600
    %v1914 = vunpack.c.h.b16 %v1600
    %v1915 = vunpack.c.l.b16 %v1601
    %v1916 = vunpack.c.l.b16 %v1602
    %v1917 = vunpack.c.h.b16 %v1602
    %v1918 = vunpack.c.l.b16 %v1603
    %v1919 = vunpack.c.l.b16 %v1604
    %v1920 = vunpack.c.h.b16 %v1604
    %v1921 = vunpack.c.l.b16 %v1605
    %v1922 = vunpack.c.l.b16 %v1606
    %v1923 = vunpack.c.h.b16 %v1606
    %v1924 = vunpack.c.l.b16 %v1607
    %v1925 = vunpack.c.l.b16 %v1608
    %v1926 = vunpack.c.h.b16 %v1608
    %v1927 = vunpack.c.l.b16 %v1609
    %v1928 = vunpack.c.l.b16 %v1610
    %v1929 = vunpack.c.h.b16 %v1610
    %v1930 = vunpack.c.l.b16 %v1611
    %v1931 = vunpack.c.l.b16 %v1612
    %v1932 = vunpack.c.h.b16 %v1612
    %v1933 = vunpack.c.l.b16 %v1613
    %v1934 = vunpack.c.l.b16 %v1614
    %v1935 = vunpack.c.h.b16 %v1614
    %v1936 = vunpack.c.l.b16 %v1615
    %v1937 = vunpack.c.l.b16 %v1616
    %v1938 = vunpack.c.h.b16 %v1616
    %v1939 = vunpack.c.l.b16 %v1617
    %v1940 = vunpack.c.l.b16 %v1618
    %v1941 = vunpack.c.h.b16 %v1618
    %v1942 = vunpack.c.l.b16 %v1619
    %v1943 = vunpack.c.l.b16 %v1620
    %v1944 = vunpack.c.h.b16 %v1620
    %v1945 = vunpack.c.l.b16 %v1621
    %v1946 = vunpack.c.l.b16 %v1622
    %v1947 = vunpack.c.h.b16 %v1622
    %v1948 = vunpack.c.l.b16 %v1623
    %v1949 = vunpack.c.l.b16 %v1624
    %v1950 = vunpack.c.h.b16 %v1624
    %v1951 = vunpack.c.l.b16 %v1625
    %v1952 = vunpack.c.l.b16 %v1626
    %v1953 = vunpack.c.h.b16 %v1626
    %v1954 = vunpack.c.l.b16 %v1627
    %v1955 = vunpack.c.l.b16 %v1628
    %v1956 = vunpack.c.h.b16 %v1628
    %v1957 = vunpack.c.l.b16 %v1629
    %v1958 = vunpack.c.l.b16 %v1630
    %v1959 = vunpack.c.h.b16 %v1630
    %v1960 = vunpack.c.l.b16 %v1631
    %v1961 = vunpack.c.l.b16 %v1632
    %v1962 = vunpack.c.h.b16 %v1632
    %v1963 = vunpack.c.l.b16 %v1633
    %v1964 = vunpack.c.l.b16 %v1634
    %v1965 = vunpack.c.h.b16 %v1634
    %v1966 = vunpack.c.l.b16 %v1635
    %v1967 = vunpack.c.l.b16 %v1636
    %v1968 = vunpack.c.h.b16 %v1636
    %v1969 = vunpack.c.l.b16 %v1637
    %v1970 = vpack.c.b16 %v1781, %v1778
    %v1971 = vpack.c.b16 %v1782, %v1779
    %v1972 = vpack.c.b16 %v1783, %v1780
    %v1973 = vpack.c.b16 %v1787, %v1784
    %v1974 = vpack.c.b16 %v1788, %v1785
    %v1975 = vpack.c.b16 %v1789, %v1786
    %v1976 = vpack.c.b16 %v1793, %v1790
    %v1977 = vpack.c.b16 %v1794, %v1791
    %v1978 = vpack.c.b16 %v1795, %v1792
    %v1979 = vpack.c.b16 %v1799, %v1796
    %v1980 = vpack.c.b16 %v1800, %v1797
    %v1981 = vpack.c.b16 %v1801, %v1798
    %v1982 = vpack.c.b16 %v1805, %v1802
    %v1983 = vpack.c.b16 %v1806, %v1803
    %v1984 = vpack.c.b16 %v1807, %v1804
    %v1985 = vpack.c.b16 %v1811, %v1808
    %v1986 = vpack.c.b16 %v1812, %v1809
    %v1987 = vpack.c.b16 %v1813, %v1810
    %v1988 = vpack.c.b16 %v1817, %v1814
    %v1989 = vpack.c.b16 %v1818, %v1815
    %v1990 = vpack.c.b16 %v1819, %v1816
    %v1991 = vpack.c.b16 %v1823, %v1820
    %v1992 = vpack.c.b16 %v1824, %v1821
    %v1993 = vpack.c.b16 %v1825, %v1822
    %v1994 = vpack.c.b16 %v1829, %v1826
    %v1995 = vpack.c.b16 %v1830, %v1827
    %v1996 = vpack.c.b16 %v1831, %v1828
    %v1997 = vpack.c.b16 %v1835, %v1832
    %v1998 = vpack.c.b16 %v1836, %v1833
    %v1999 = vpack.c.b16 %v1837, %v1834
    %v2000 = vpack.c.b16 %v1841, %v1838
    %v2001 = vpack.c.b16 %v1842, %v1839
    %v2002 = vpack.c.b16 %v1843, %v1840
    %v2003 = vpack.c.b16 %v1847, %v1844
    %v2004 = vpack.c.b16 %v1848, %v1845
    %v2005 = vpack.c.b16 %v1849, %v1846
    %v2006 = vpack.c.b16 %v1853, %v1850
    %v2007 = vpack.c.b16 %v1854, %v1851
    %v2008 = vpack.c.b16 %v1855, %v1852
    %v2009 = vpack.c.b16 %v1859, %v1856
    %v2010 = vpack.c.b16 %v1860, %v1857
    %v2011 = vpack.c.b16 %v1861, %v1858
    %v2012 = vpack.c.b16 %v1865, %v1862
    %v2013 = vpack.c.b16 %v1866, %v1863
    %v2014 = vpack.c.b16 %v1867, %v1864
    %v2015 = vpack.c.b16 %v1871, %v1868
    %v2016 = vpack.c.b16 %v1872, %v1869
    %v2017 = vpack.c.b16 %v1873, %v1870
    %v2018 = vpack.c.b16 %v1877, %v1874
    %v2019 = vpack.c.b16 %v1878, %v1875
    %v2020 = vpack.c.b16 %v1879, %v1876
    %v2021 = vpack.c.b16 %v1883, %v1880
    %v2022 = vpack.c.b16 %v1884, %v1881
    %v2023 = vpack.c.b16 %v1885, %v1882
    %v2024 = vpack.c.b16 %v1889, %v1886
    %v2025 = vpack.c.b16 %v1890, %v1887
    %v2026 = vpack.c.b16 %v1891, %v1888
    %v2027 = vpack.c.b16 %v1895, %v1892
    %v2028 = vpack.c.b16 %v1896, %v1893
    %v2029 = vpack.c.b16 %v1897, %v1894
    %v2030 = vpack.c.b16 %v1901, %v1898
    %v2031 = vpack.c.b16 %v1902, %v1899
    %v2032 = vpack.c.b16 %v1903, %v1900
    %v2033 = vpack.c.b16 %v1907, %v1904
    %v2034 = vpack.c.b16 %v1908, %v1905
    %v2035 = vpack.c.b16 %v1909, %v1906
    %v2036 = vpack.c.b16 %v1913, %v1910
    %v2037 = vpack.c.b16 %v1914, %v1911
    %v2038 = vpack.c.b16 %v1915, %v1912
    %v2039 = vpack.c.b16 %v1919, %v1916
    %v2040 = vpack.c.b16 %v1920, %v1917
    %v2041 = vpack.c.b16 %v1921, %v1918
    %v2042 = vpack.c.b16 %v1925, %v1922
    %v2043 = vpack.c.b16 %v1926, %v1923
    %v2044 = vpack.c.b16 %v1927, %v1924
    %v2045 = vpack.c.b16 %v1931, %v1928
    %v2046 = vpack.c.b16 %v1932, %v1929
    %v2047 = vpack.c.b16 %v1933, %v1930
    %v2048 = vpack.c.b16 %v1937, %v1934
    %v2049 = vpack.c.b16 %v1938, %v1935
    %v2050 = vpack.c.b16 %v1939, %v1936
    %v2051 = vpack.c.b16 %v1943, %v1940
    %v2052 = vpack.c.b16 %v1944, %v1941
    %v2053 = vpack.c.b16 %v1945, %v1942
    %v2054 = vpack.c.b16 %v1949, %v1946
    %v2055 = vpack.c.b16 %v1950, %v1947
    %v2056 = vpack.c.b16 %v1951, %v1948
    %v2057 = vpack.c.b16 %v1955, %v1952
    %v2058 = vpack.c.b16 %v1956, %v1953
    %v2059 = vpack.c.b16 %v1957, %v1954
    %v2060 = vpack.c.b16 %v1961, %v1958
    %v2061 = vpack.c.b16 %v1962, %v1959
    %v2062 = vpack.c.b16 %v1963, %v1960
    %v2063 = vpack.c.b16 %v1967, %v1964
    %v2064 = vpack.c.b16 %v1968, %v1965
    %v2065 = vpack.c.b16 %v1969, %v1966
    %2162 = vmatprep.subr.bf16.mxu0 %v1971
    %2163 = vmatpush1.bf16.msra.mxu0 %v1970
    %2164 = vmatprep.subr.bf16.mxu0 %v1974
    %2165 = vmatpush1.bf16.msra.mxu0 %v1973
    %2166 = vmatprep.subr.bf16.mxu0 %v1977
    %2167 = vmatpush1.bf16.msra.mxu0 %v1976
    %2168 = vmatprep.subr.bf16.mxu0 %v1980
    %2169 = vmatpush1.bf16.msra.mxu0 %v1979
    %2170 = vmatprep.subr.bf16.mxu0 %v1983
    %2171 = vmatpush1.bf16.msra.mxu0 %v1982
    %2172 = vmatprep.subr.bf16.mxu0 %v1986
    %2173 = vmatpush1.bf16.msra.mxu0 %v1985
    %2174 = vmatprep.subr.bf16.mxu0 %v1989
    %2175 = vmatpush1.bf16.msra.mxu0 %v1988
    %2176 = vmatprep.subr.bf16.mxu0 %v1992
    %2177 = vmatpush1.bf16.msra.mxu0 %v1991
    %2178 = vmatprep.subr.bf16.mxu0 %v1995
    %2179 = vmatpush1.bf16.msra.mxu0 %v1994
    %2180 = vmatprep.subr.bf16.mxu0 %v1998
    %2181 = vmatpush1.bf16.msra.mxu0 %v1997
    %2182 = vmatprep.subr.bf16.mxu0 %v2001
    %2183 = vmatpush1.bf16.msra.mxu0 %v2000
    %2184 = vmatprep.subr.bf16.mxu0 %v2004
    %2185 = vmatpush1.bf16.msra.mxu0 %v2003
    %2186 = vmatprep.subr.bf16.mxu0 %v2007
    %2187 = vmatpush1.bf16.msra.mxu0 %v2006
    %2188 = vmatprep.subr.bf16.mxu0 %v2010
    %2189 = vmatpush1.bf16.msra.mxu0 %v2009
    %2190 = vmatprep.subr.bf16.mxu0 %v2013
    %2191 = vmatpush1.bf16.msra.mxu0 %v2012
    %2192 = vmatprep.subr.bf16.mxu0 %v2016
    %2193 = vmatpush1.bf16.msra.mxu0 %v2015
    %2194 = vmatprep.mubr.bf16.mxu0 %v1506
    %2195 = vmatmul.mubr.bf16.gmra.mrb[0].mxu0 %v1505
    %v2196 = vpop.f32.mrb[0].mxu0
    %v2197 = vadd.f32 %v1641, %v2196
    %v2198 = vpop.f32.mrb[0].mxu0
    %v2199 = vadd.f32 %v1645, %v2198
    %v2200 = vpop.f32.mrb[0].mxu0
    %v2201 = vpop.f32.mrb[0].mxu0
    %2202 = vdwg.mxu0
    %2203 = vmatprep.subr.bf16.mxu0 %v2019
    %2204 = vmatpush1.bf16.msra.mxu0 %v2018
    %2205 = vmatprep.subr.bf16.mxu0 %v2022
    %2206 = vmatpush1.bf16.msra.mxu0 %v2021
    %2207 = vmatprep.subr.bf16.mxu0 %v2025
    %2208 = vmatpush1.bf16.msra.mxu0 %v2024
    %2209 = vmatprep.subr.bf16.mxu0 %v2028
    %2210 = vmatpush1.bf16.msra.mxu0 %v2027
    %2211 = vmatprep.subr.bf16.mxu0 %v2031
    %2212 = vmatpush1.bf16.msra.mxu0 %v2030
    %2213 = vmatprep.subr.bf16.mxu0 %v2034
    %2214 = vmatpush1.bf16.msra.mxu0 %v2033
    %2215 = vmatprep.subr.bf16.mxu0 %v2037
    %2216 = vmatpush1.bf16.msra.mxu0 %v2036
    %2217 = vmatprep.subr.bf16.mxu0 %v2040
    %2218 = vmatpush1.bf16.msra.mxu0 %v2039
    %2219 = vmatprep.subr.bf16.mxu0 %v2043
    %2220 = vmatpush1.bf16.msra.mxu0 %v2042
    %2221 = vmatprep.subr.bf16.mxu0 %v2046
    %2222 = vmatpush1.bf16.msra.mxu0 %v2045
    %2223 = vmatprep.subr.bf16.mxu0 %v2049
    %2224 = vmatpush1.bf16.msra.mxu0 %v2048
    %2225 = vmatprep.subr.bf16.mxu0 %v2052
    %2226 = vmatpush1.bf16.msra.mxu0 %v2051
    %2227 = vmatprep.subr.bf16.mxu0 %v2055
    %2228 = vmatpush1.bf16.msra.mxu0 %v2054
    %2229 = vmatprep.subr.bf16.mxu0 %v2058
    %2230 = vmatpush1.bf16.msra.mxu0 %v2057
    %2231 = vmatprep.subr.bf16.mxu0 %v2061
    %2232 = vmatpush1.bf16.msra.mxu0 %v2060
    %2233 = vmatprep.subr.bf16.mxu0 %v2064
    %2234 = vmatpush1.bf16.msra.mxu0 %v2063
    %2235 = vmatprep.mubr.bf16.mxu0 %v1508
    %2236 = vmatmul.mubr.bf16.gmra.mrb[0].mxu0 %v1507
    %v2237 = vpop.f32.mrb[0].mxu0
    %v2238 = vadd.f32 %v2197, %v2237
    %v2239 = vpop.f32.mrb[0].mxu0
    %v2240 = vadd.f32 %v2199, %v2239
    %v2241 = vpop.f32.mrb[0].mxu0
    %v2242 = vpop.f32.mrb[0].mxu0
    %2243 = vdwg.mxu0
    %2244 = vmatprep.subr.bf16.mxu0 0
    %2245 = vmatpush1.bf16.msra.mxu0 %v1972
    %2246 = vmatprep.subr.bf16.mxu0 0
    %2247 = vmatpush1.bf16.msra.mxu0 %v1975
    %2248 = vmatprep.subr.bf16.mxu0 0
    %2249 = vmatpush1.bf16.msra.mxu0 %v1978
    %2250 = vmatprep.subr.bf16.mxu0 0
    %2251 = vmatpush1.bf16.msra.mxu0 %v1981
    %2252 = vmatprep.subr.bf16.mxu0 0
    %2253 = vmatpush1.bf16.msra.mxu0 %v1984
    %2254 = vmatprep.subr.bf16.mxu0 0
    %2255 = vmatpush1.bf16.msra.mxu0 %v1987
    %2256 = vmatprep.subr.bf16.mxu0 0
    %2257 = vmatpush1.bf16.msra.mxu0 %v1990
    %2258 = vmatprep.subr.bf16.mxu0 0
    %2259 = vmatpush1.bf16.msra.mxu0 %v1993
    %2260 = vmatprep.subr.bf16.mxu0 0
    %2261 = vmatpush1.bf16.msra.mxu0 %v1996
    %2262 = vmatprep.subr.bf16.mxu0 0
    %2263 = vmatpush1.bf16.msra.mxu0 %v1999
    %2264 = vmatprep.subr.bf16.mxu0 0
    %2265 = vmatpush1.bf16.msra.mxu0 %v2002
    %2266 = vmatprep.subr.bf16.mxu0 0
    %2267 = vmatpush1.bf16.msra.mxu0 %v2005
    %2268 = vmatprep.subr.bf16.mxu0 0
    %2269 = vmatpush1.bf16.msra.mxu0 %v2008
    %2270 = vmatprep.subr.bf16.mxu0 0
    %2271 = vmatpush1.bf16.msra.mxu0 %v2011
    %2272 = vmatprep.subr.bf16.mxu0 0
    %2273 = vmatpush1.bf16.msra.mxu0 %v2014
    %2274 = vmatprep.subr.bf16.mxu0 0
    %2275 = vmatpush1.bf16.msra.mxu0 %v2017
    %2276 = vmatprep.mubr.bf16.mxu0 %v1506
    %2277 = vmatmul.mubr.bf16.gmra.mrb[0].mxu0 %v1505
    %v2278 = vpop.f32.mrb[0].mxu0
    %v2279 = vadd.f32 %v1649, %v2278
    %v2280 = vpop.f32.mrb[0].mxu0
    %v2281 = vpop.f32.mrb[0].mxu0
    %v2282 = vpop.f32.mrb[0].mxu0
    %2283 = vdwg.mxu0
    %2284 = vmatprep.subr.bf16.mxu0 0
    %2285 = vmatpush1.bf16.msra.mxu0 %v2020
    %2286 = vmatprep.subr.bf16.mxu0 0
    %2287 = vmatpush1.bf16.msra.mxu0 %v2023
    %2288 = vmatprep.subr.bf16.mxu0 0
    %2289 = vmatpush1.bf16.msra.mxu0 %v2026
    %2290 = vmatprep.subr.bf16.mxu0 0
    %2291 = vmatpush1.bf16.msra.mxu0 %v2029
    %2292 = vmatprep.subr.bf16.mxu0 0
    %2293 = vmatpush1.bf16.msra.mxu0 %v2032
    %2294 = vmatprep.subr.bf16.mxu0 0
    %2295 = vmatpush1.bf16.msra.mxu0 %v2035
    %2296 = vmatprep.subr.bf16.mxu0 0
    %2297 = vmatpush1.bf16.msra.mxu0 %v2038
    %2298 = vmatprep.subr.bf16.mxu0 0
    %2299 = vmatpush1.bf16.msra.mxu0 %v2041
    %2300 = vmatprep.subr.bf16.mxu0 0
    %2301 = vmatpush1.bf16.msra.mxu0 %v2044
    %2302 = vmatprep.subr.bf16.mxu0 0
    %2303 = vmatpush1.bf16.msra.mxu0 %v2047
    %2304 = vmatprep.subr.bf16.mxu0 0
    %2305 = vmatpush1.bf16.msra.mxu0 %v2050
    %2306 = vmatprep.subr.bf16.mxu0 0
    %2307 = vmatpush1.bf16.msra.mxu0 %v2053
    %2308 = vmatprep.subr.bf16.mxu0 0
    %2309 = vmatpush1.bf16.msra.mxu0 %v2056
    %2310 = vmatprep.subr.bf16.mxu0 0
    %2311 = vmatpush1.bf16.msra.mxu0 %v2059
    %2312 = vmatprep.subr.bf16.mxu0 0
    %2313 = vmatpush1.bf16.msra.mxu0 %v2062
    %2314 = vmatprep.subr.bf16.mxu0 0
    %2315 = vmatpush1.bf16.msra.mxu0 %v2065
    %2316 = vmatprep.mubr.bf16.mxu0 %v1508
    %2317 = vmatmul.mubr.bf16.gmra.mrb[0].mxu0 %v1507
    %v2318 = vpop.f32.mrb[0].mxu0
    %v2319 = vadd.f32 %v2279, %v2318
    %v2320 = vpop.f32.mrb[0].mxu0
    %v2321 = vpop.f32.mrb[0].mxu0
    %v2322 = vpop.f32.mrb[0].mxu0
    %2323 = vdwg.mxu0
    %v2324 = vmax.f32 %v2238, 0.0
    %v2325 = vmax.f32 %v2240, 0.0
    %v2326 = vmax.f32 %v2319, 0.0
    %v2327 = vlaneseq
    %v2328 = vshrl.u32 %v2327, 7
    %v2329 = vsub.s32 2, %v2328
    %v2330 = vrot.slane %v87, %v2329
    %v2331 = vlaneseq
    %v2332 = vshrl.u32 %v2331, 7
    %v2333 = vsub.s32 2, %v2332
    %v2334 = vrot.slane %v88, %v2333
    %v2335 = vlaneseq
    %v2336 = vshrl.u32 %v2335, 7
    %v2337 = vsub.s32 2, %v2336
    %v2338 = vrot.slane %v89, %v2337
    %v2339 = vmul.f32 %v1502, %v2330
    %v2340 = vmul.f32 %v1503, %v2334
    %v2341 = vmul.f32 %v1504, %v2338
    %v2342 = vadd.f32 %v2339, %v2340
    %v2343 = vadd.f32 %v2342, %v2341
    %2344 = vadd.xlane.f32.xlu0 %v2343
    %v2345 = vpop.xlane.xlu0 %2344
    %v2346 = vlaneseq
    %v2347 = vshrl.u32 %v2346, 7
    %v2348 = vsub.s32 3, %v2347
    %v2349 = vrot.slane %v87, %v2348
    %v2350 = vadd.f32 %v2345, %v2349
    %v2351 = vlaneseq
    %v2352 = vshrl.u32 %v2351, 7
    %v2353 = vsub.s32 2, %v2352
    %v2354 = vrot.slane %v90, %v2353
    %v2355 = vlaneseq
    %v2356 = vshrl.u32 %v2355, 7
    %v2357 = vsub.s32 2, %v2356
    %v2358 = vrot.slane %v91, %v2357
    %v2359 = vlaneseq
    %v2360 = vshrl.u32 %v2359, 7
    %v2361 = vsub.s32 2, %v2360
    %v2362 = vrot.slane %v92, %v2361
    %v2363 = vmul.f32 %v2324, %v2354
    %v2364 = vmul.f32 %v2325, %v2358
    %v2365 = vmul.f32 %v2326, %v2362
    %v2366 = vadd.f32 %v2363, %v2364
    %v2367 = vadd.f32 %v2366, %v2365
    %2368 = vadd.xlane.f32.xlu0 %v2367
    %v2369 = vpop.xlane.xlu0 %2368
    %v2370 = vadd.f32 %v2369, %v2349
    %v2371 = vld [vmem:[#allocation8] sm:$0xff]
    %v2372 = vld [vmem:[#allocation8 + $0x8] sm:$0xff]
    %v2373 = vld [vmem:[#allocation8 + $0x10] sm:$0xff]
    %v2374 = vld [vmem:[#allocation8 + $0x18] sm:$0xff]
    %v2375 = vld [vmem:[#allocation8 + $0x20] sm:$0xff]
    %v2376 = vld [vmem:[#allocation8 + $0x28] sm:$0xff]
    %v2377 = vld [vmem:[#allocation8 + $0x30] sm:$0xff]
    %v2378 = vld [vmem:[#allocation8 + $0x38] sm:$0xff]
    %v2379 = vld [vmem:[#allocation8 + $0x40] sm:$0xff]
    %v2380 = vld [vmem:[#allocation8 + $0x48] sm:$0xff]
    %v2381 = vld [vmem:[#allocation8 + $0x50] sm:$0xff]
    %v2382 = vld [vmem:[#allocation8 + $0x58] sm:$0xff]
    %v2383 = vld [vmem:[#allocation8 + $0x60] sm:$0xff]
    %v2384 = vld [vmem:[#allocation8 + $0x68] sm:$0xff]
    %v2385 = vld [vmem:[#allocation8 + $0x70] sm:$0xff]
    %v2386 = vld [vmem:[#allocation8 + $0x78] sm:$0xff]
    %v2387 = vlaneseq
    %v2388 = vshrl.u32 %v2387, 7
    %v2389 = vsub.s32 4, %v2388
    %v2390 = vrot.slane %v87, %v2389
    %2391 = vmatprep.subr.mxu0 0.0
    %2392 = vmatpush1.msra.mxu0 %v2371
    %2393 = vmatprep.subr.mxu0 0.0
    %2394 = vmatpush1.msra.mxu0 %v2372
    %2395 = vmatprep.subr.mxu0 0.0
    %2396 = vmatpush1.msra.mxu0 %v2373
    %2397 = vmatprep.subr.mxu0 0.0
    %2398 = vmatpush1.msra.mxu0 %v2374
    %2399 = vmatprep.subr.mxu0 0.0
    %2400 = vmatpush1.msra.mxu0 %v2375
    %2401 = vmatprep.subr.mxu0 0.0
    %2402 = vmatpush1.msra.mxu0 %v2376
    %2403 = vmatprep.subr.mxu0 0.0
    %2404 = vmatpush1.msra.mxu0 %v2377
    %2405 = vmatprep.subr.mxu0 0.0
    %2406 = vmatpush1.msra.mxu0 %v2378
    %2407 = vmatprep.subr.mxu0 0.0
    %2408 = vmatpush1.msra.mxu0 %v2379
    %2409 = vmatprep.subr.mxu0 0.0
    %2410 = vmatpush1.msra.mxu0 %v2380
    %2411 = vmatprep.subr.mxu0 0.0
    %2412 = vmatpush1.msra.mxu0 %v2381
    %2413 = vmatprep.subr.mxu0 0.0
    %2414 = vmatpush1.msra.mxu0 %v2382
    %2415 = vmatprep.subr.mxu0 0.0
    %2416 = vmatpush1.msra.mxu0 %v2383
    %2417 = vmatprep.subr.mxu0 0.0
    %2418 = vmatpush1.msra.mxu0 %v2384
    %2419 = vmatprep.subr.mxu0 0.0
    %2420 = vmatpush1.msra.mxu0 %v2385
    %2421 = vmatprep.subr.mxu0 0.0
    %2422 = vmatpush1.msra.mxu0 %v2386
    %2423 = vmatprep.subr.mxu0 0.0
    %2424 = vmatpush1.msra.mxu0 0.0
    %2425 = vmatprep.subr.mxu0 0.0
    %2426 = vmatpush1.msra.mxu0 0.0
    %2427 = vmatprep.subr.mxu0 0.0
    %2428 = vmatpush1.msra.mxu0 0.0
    %2429 = vmatprep.subr.mxu0 0.0
    %2430 = vmatpush1.msra.mxu0 0.0
    %2431 = vmatprep.subr.mxu0 0.0
    %2432 = vmatpush1.msra.mxu0 0.0
    %2433 = vmatprep.subr.mxu0 0.0
    %2434 = vmatpush1.msra.mxu0 0.0
    %2435 = vmatprep.subr.mxu0 0.0
    %2436 = vmatpush1.msra.mxu0 0.0
    %2437 = vmatprep.subr.mxu0 0.0
    %2438 = vmatpush1.msra.mxu0 0.0
    %2439 = vmatprep.subr.mxu0 0.0
    %2440 = vmatpush1.msra.mxu0 0.0
    %2441 = vmatprep.subr.mxu0 0.0
    %2442 = vmatpush1.msra.mxu0 0.0
    %2443 = vmatprep.subr.mxu0 0.0
    %2444 = vmatpush1.msra.mxu0 0.0
    %2445 = vmatprep.subr.mxu0 0.0
    %2446 = vmatpush1.msra.mxu0 0.0
    %2447 = vmatprep.subr.mxu0 0.0
    %2448 = vmatpush1.msra.mxu0 0.0
    %2449 = vmatprep.subr.mxu0 0.0
    %2450 = vmatpush1.msra.mxu0 0.0
    %2451 = vmatprep.subr.mxu0 0.0
    %2452 = vmatpush1.msra.mxu0 0.0
    %2453 = vmatprep.subr.mxu0 0.0
    %2454 = vmatpush1.msra.mxu0 0.0
    %2455 = vmatprep.mubr.f32.mxu0 0.0
    %2456 = vmatmul.mubr.f32.gmra.mrb[0].mxu0 %v86
    %v2457 = vpop.f32.mrb[0].mxu0
    %v2458 = vadd.f32 %v2390, %v2457
    %v2459 = vpop.f32.mrb[0].mxu0
    %2460 = vdwg.mxu0
    %v2461 = vmul.f32 %v2458, %v2458
    %2462 = vadd.xlane.f32.xlu0 %v2461
    %v2463 = vpop.xlane.xlu0 %2462
    %v2464 = vmax.f32 %v2463, 1e-24
    %v2465 = vrsqrt.pop %v2464
    %v2466 = vmul.f32 %v2458, %v2465
    %v2467 = vlaneseq
    %v2468 = vand.u32 %v2467, 127
    %vm2469 = vcmp.lt.s32.totalorder %v2468, 64
    %v2470 = vsel %vm2469, %v2466, %v86
    %v2471 = vtanh.pop %v2470
    %s2472 = scalar_lea.vmem [#allocation8], 128
    %v2473 = vld [vmem:[%s2472] sm:$0xff]
    %v2474 = vld [vmem:[%s2472 + $0x8] sm:$0xff]
    %v2475 = vld [vmem:[%s2472 + $0x10] sm:$0xff]
    %v2476 = vld [vmem:[%s2472 + $0x18] sm:$0xff]
    %v2477 = vld [vmem:[%s2472 + $0x20] sm:$0xff]
    %v2478 = vld [vmem:[%s2472 + $0x28] sm:$0xff]
    %v2479 = vld [vmem:[%s2472 + $0x30] sm:$0xff]
    %v2480 = vld [vmem:[%s2472 + $0x38] sm:$0xff]
    %v2481 = vld [vmem:[%s2472 + $0x40] sm:$0xff]
    %v2482 = vld [vmem:[%s2472 + $0x48] sm:$0xff]
    %v2483 = vld [vmem:[%s2472 + $0x50] sm:$0xff]
    %v2484 = vld [vmem:[%s2472 + $0x58] sm:$0xff]
    %v2485 = vld [vmem:[%s2472 + $0x60] sm:$0xff]
    %v2486 = vld [vmem:[%s2472 + $0x68] sm:$0xff]
    %v2487 = vld [vmem:[%s2472 + $0x70] sm:$0xff]
    %v2488 = vld [vmem:[%s2472 + $0x78] sm:$0xff]
    %v2489 = vlaneseq
    %v2490 = vshrl.u32 %v2489, 7
    %v2491 = vsub.s32 5, %v2490
    %v2492 = vrot.slane %v87, %v2491
    %2493 = vmatprep.subr.mxu0 0.0
    %2494 = vmatpush1.msra.mxu0 %v2473
    %2495 = vmatprep.subr.mxu0 0.0
    %2496 = vmatpush1.msra.mxu0 %v2474
    %2497 = vmatprep.subr.mxu0 0.0
    %2498 = vmatpush1.msra.mxu0 %v2475
    %2499 = vmatprep.subr.mxu0 0.0
    %2500 = vmatpush1.msra.mxu0 %v2476
    %2501 = vmatprep.subr.mxu0 0.0
    %2502 = vmatpush1.msra.mxu0 %v2477
    %2503 = vmatprep.subr.mxu0 0.0
    %2504 = vmatpush1.msra.mxu0 %v2478
    %2505 = vmatprep.subr.mxu0 0.0
    %2506 = vmatpush1.msra.mxu0 %v2479
    %2507 = vmatprep.subr.mxu0 0.0
    %2508 = vmatpush1.msra.mxu0 %v2480
    %2509 = vmatprep.subr.mxu0 0.0
    %2510 = vmatpush1.msra.mxu0 %v2481
    %2511 = vmatprep.subr.mxu0 0.0
    %2512 = vmatpush1.msra.mxu0 %v2482
    %2513 = vmatprep.subr.mxu0 0.0
    %2514 = vmatpush1.msra.mxu0 %v2483
    %2515 = vmatprep.subr.mxu0 0.0
    %2516 = vmatpush1.msra.mxu0 %v2484
    %2517 = vmatprep.subr.mxu0 0.0
    %2518 = vmatpush1.msra.mxu0 %v2485
    %2519 = vmatprep.subr.mxu0 0.0
    %2520 = vmatpush1.msra.mxu0 %v2486
    %2521 = vmatprep.subr.mxu0 0.0
    %2522 = vmatpush1.msra.mxu0 %v2487
    %2523 = vmatprep.subr.mxu0 0.0
    %2524 = vmatpush1.msra.mxu0 %v2488
    %2525 = vmatprep.subr.mxu0 0.0
    %2526 = vmatpush1.msra.mxu0 0.0
    %2527 = vmatprep.subr.mxu0 0.0
    %2528 = vmatpush1.msra.mxu0 0.0
    %2529 = vmatprep.subr.mxu0 0.0
    %2530 = vmatpush1.msra.mxu0 0.0
    %2531 = vmatprep.subr.mxu0 0.0
    %2532 = vmatpush1.msra.mxu0 0.0
    %2533 = vmatprep.subr.mxu0 0.0
    %2534 = vmatpush1.msra.mxu0 0.0
    %2535 = vmatprep.subr.mxu0 0.0
    %2536 = vmatpush1.msra.mxu0 0.0
    %2537 = vmatprep.subr.mxu0 0.0
    %2538 = vmatpush1.msra.mxu0 0.0
    %2539 = vmatprep.subr.mxu0 0.0
    %2540 = vmatpush1.msra.mxu0 0.0
    %2541 = vmatprep.subr.mxu0 0.0
    %2542 = vmatpush1.msra.mxu0 0.0
    %2543 = vmatprep.subr.mxu0 0.0
    %2544 = vmatpush1.msra.mxu0 0.0
    %2545 = vmatprep.subr.mxu0 0.0
    %2546 = vmatpush1.msra.mxu0 0.0
    %2547 = vmatprep.subr.mxu0 0.0
    %2548 = vmatpush1.msra.mxu0 0.0
    %2549 = vmatprep.subr.mxu0 0.0
    %2550 = vmatpush1.msra.mxu0 0.0
    %2551 = vmatprep.subr.mxu0 0.0
    %2552 = vmatpush1.msra.mxu0 0.0
    %2553 = vmatprep.subr.mxu0 0.0
    %2554 = vmatpush1.msra.mxu0 0.0
    %2555 = vmatprep.subr.mxu0 0.0
    %2556 = vmatpush1.msra.mxu0 0.0
    %2557 = vmatprep.mubr.f32.mxu0 0.0
    %2558 = vmatmul.mubr.f32.gmra.mrb[0].mxu0 %v2471
    %v2559 = vpop.f32.mrb[0].mxu0
    %v2560 = vadd.f32 %v2492, %v2559
    %v2561 = vpop.f32.mrb[0].mxu0
    %2562 = vdwg.mxu0
    %v2563 = vtanh.pop %v2560
    %s2564 = scalar_lea.vmem [#allocation8], 256
    %v2565 = vld [vmem:[%s2564] sm:$0xff]
    %v2566 = vld [vmem:[%s2564 + $0x8] sm:$0xff]
    %v2567 = vld [vmem:[%s2564 + $0x10] sm:$0xff]
    %v2568 = vld [vmem:[%s2564 + $0x18] sm:$0xff]
    %v2569 = vld [vmem:[%s2564 + $0x20] sm:$0xff]
    %v2570 = vld [vmem:[%s2564 + $0x28] sm:$0xff]
    %v2571 = vld [vmem:[%s2564 + $0x30] sm:$0xff]
    %v2572 = vld [vmem:[%s2564 + $0x38] sm:$0xff]
    %v2573 = vld [vmem:[%s2564 + $0x40] sm:$0xff]
    %v2574 = vld [vmem:[%s2564 + $0x48] sm:$0xff]
    %v2575 = vld [vmem:[%s2564 + $0x50] sm:$0xff]
    %v2576 = vld [vmem:[%s2564 + $0x58] sm:$0xff]
    %v2577 = vld [vmem:[%s2564 + $0x60] sm:$0xff]
    %v2578 = vld [vmem:[%s2564 + $0x68] sm:$0xff]
    %v2579 = vld [vmem:[%s2564 + $0x70] sm:$0xff]
    %v2580 = vld [vmem:[%s2564 + $0x78] sm:$0xff]
    %v2581 = vlaneseq
    %v2582 = vshrl.u32 %v2581, 7
    %v2583 = vsub.s32 6, %v2582
    %v2584 = vrot.slane %v87, %v2583
    %2585 = vmatprep.subr.mxu0 0.0
    %2586 = vmatpush1.msra.mxu0 %v2565
    %2587 = vmatprep.subr.mxu0 0.0
    %2588 = vmatpush1.msra.mxu0 %v2566
    %2589 = vmatprep.subr.mxu0 0.0
    %2590 = vmatpush1.msra.mxu0 %v2567
    %2591 = vmatprep.subr.mxu0 0.0
    %2592 = vmatpush1.msra.mxu0 %v2568
    %2593 = vmatprep.subr.mxu0 0.0
    %2594 = vmatpush1.msra.mxu0 %v2569
    %2595 = vmatprep.subr.mxu0 0.0
    %2596 = vmatpush1.msra.mxu0 %v2570
    %2597 = vmatprep.subr.mxu0 0.0
    %2598 = vmatpush1.msra.mxu0 %v2571
    %2599 = vmatprep.subr.mxu0 0.0
    %2600 = vmatpush1.msra.mxu0 %v2572
    %2601 = vmatprep.subr.mxu0 0.0
    %2602 = vmatpush1.msra.mxu0 %v2573
    %2603 = vmatprep.subr.mxu0 0.0
    %2604 = vmatpush1.msra.mxu0 %v2574
    %2605 = vmatprep.subr.mxu0 0.0
    %2606 = vmatpush1.msra.mxu0 %v2575
    %2607 = vmatprep.subr.mxu0 0.0
    %2608 = vmatpush1.msra.mxu0 %v2576
    %2609 = vmatprep.subr.mxu0 0.0
    %2610 = vmatpush1.msra.mxu0 %v2577
    %2611 = vmatprep.subr.mxu0 0.0
    %2612 = vmatpush1.msra.mxu0 %v2578
    %2613 = vmatprep.subr.mxu0 0.0
    %2614 = vmatpush1.msra.mxu0 %v2579
    %2615 = vmatprep.subr.mxu0 0.0
    %2616 = vmatpush1.msra.mxu0 %v2580
    %2617 = vmatprep.subr.mxu0 0.0
    %2618 = vmatpush1.msra.mxu0 0.0
    %2619 = vmatprep.subr.mxu0 0.0
    %2620 = vmatpush1.msra.mxu0 0.0
    %2621 = vmatprep.subr.mxu0 0.0
    %2622 = vmatpush1.msra.mxu0 0.0
    %2623 = vmatprep.subr.mxu0 0.0
    %2624 = vmatpush1.msra.mxu0 0.0
    %2625 = vmatprep.subr.mxu0 0.0
    %2626 = vmatpush1.msra.mxu0 0.0
    %2627 = vmatprep.subr.mxu0 0.0
    %2628 = vmatpush1.msra.mxu0 0.0
    %2629 = vmatprep.subr.mxu0 0.0
    %2630 = vmatpush1.msra.mxu0 0.0
    %2631 = vmatprep.subr.mxu0 0.0
    %2632 = vmatpush1.msra.mxu0 0.0
    %2633 = vmatprep.subr.mxu0 0.0
    %2634 = vmatpush1.msra.mxu0 0.0
    %2635 = vmatprep.subr.mxu0 0.0
    %2636 = vmatpush1.msra.mxu0 0.0
    %2637 = vmatprep.subr.mxu0 0.0
    %2638 = vmatpush1.msra.mxu0 0.0
    %2639 = vmatprep.subr.mxu0 0.0
    %2640 = vmatpush1.msra.mxu0 0.0
    %2641 = vmatprep.subr.mxu0 0.0
    %2642 = vmatpush1.msra.mxu0 0.0
    %2643 = vmatprep.subr.mxu0 0.0
    %2644 = vmatpush1.msra.mxu0 0.0
    %2645 = vmatprep.subr.mxu0 0.0
    %2646 = vmatpush1.msra.mxu0 0.0
    %2647 = vmatprep.subr.mxu0 0.0
    %2648 = vmatpush1.msra.mxu0 0.0
    %2649 = vmatprep.mubr.f32.mxu0 0.0
    %2650 = vmatmul.mubr.f32.gmra.mrb[0].mxu0 %v2563
    %v2651 = vpop.f32.mrb[0].mxu0
    %v2652 = vadd.f32 %v2584, %v2651
    %v2653 = vpop.f32.mrb[0].mxu0
    %2654 = vdwg.mxu0
    %v2655 = vmul.f32 %v2652, %v2652
    %2656 = vadd.xlane.f32.xlu0 %v2655
    %v2657 = vpop.xlane.xlu0 %2656
    %v2658 = vmax.f32 %v2657, 1e-24
    %v2659 = vrsqrt.pop %v2658
    %v2660 = vmul.f32 %v2652, %v2659
    %vm2661 = vcmp.eq.s32.totalorder %v2468, 32
    %2663 = vset.pattern.permute.xlu0 0
    %2664 = vperm.xlu0 %2663, %v2350
    %v2665 = vpop.permute.xlu0 %2664
    %v2667 = vsel %vm2661, %v2665, %v2660
    %vm2668 = vcmp.eq.s32.totalorder %v2468, 33
    %2670 = vset.pattern.permute.xlu0 1
    %2671 = vperm.xlu0 %2670, %v2370
    %v2672 = vpop.permute.xlu0 %2671
    %v2674 = vsel %vm2668, %v2672, %v2667
    %2675 = vst [vmem:[#allocation11] sm:$0xff] %v2674
    // Predicated region
    $region42: #{tpu_custom_call.1} parent=1 // pred_check
      _
    $region43: #{tpu_custom_call.1} parent=1 // pred_check_branch
      %2677 = sbr.rel (0) target = $region45
    $region44: #{tpu_custom_call.1} parent=1 // pred_region
      %s2679 = ssub.s32 128, 128
      %2680 = vsyncadd [#allocation4], %s2679
      %s2682 = sshll.u32 [#allocation11], 4
      %s2683 = int_to_ptr.vmem [resolvable:$true] %s2682
      %2685 = dma.vmem_to_hbm [thread:$0]  %s2683, 128, %s5, [#allocation4]
    $region45: #{tpu_custom_call.1} parent=1 // pred_fallthru
      _
    // Predicated region
    $region46: #{tpu_custom_call.1} parent=1 // pred_check
      _
    $region47: #{tpu_custom_call.1} parent=1 // pred_check_branch
      %2687 = sbr.rel (0) target = $region49
    $region48: #{tpu_custom_call.1} parent=1 // pred_region
      %2688 = dma.done [#allocation4], 128
    $region49: #{tpu_custom_call.1} parent=1 // pred_fallthru
      _
    %2689 = vsyncpa [#allocation3], 1
    %2690 = vsyncpa [#allocation6], 1
    %2691 = vsyncpa [#allocation9], 1
    %2692 = vsyncpa [#allocation4], 1

</llo_original>
